<compile_context>
chip_gen: v5e
topology: v5e:2x2
jax: 0.10.0
libtpu: 0.0.40
codegen_flags: <defaults>
</compile_context>

<pallas_src>
import jax
import jax.numpy as jnp
from jax.experimental import pallas as pl
from jax.experimental.pallas import tpu as pltpu

_LANES = 128
_PADW = 8   # left-halo block in the in-kernel workspace -> image sits at a sublane-aligned offset


def _earlyexit_kernel(x_ref, wconv_ref, gamma_ref, beta_ref, wfc_ref, bfc_ref,
                      out_ref, xp_ref, conv_ref, sum_ref, ssq_ref):
    # x_ref    : (NB, H, W, Cin)            current batch tile (f32, NHWC)
    # wconv_ref: (9*Cin, Cout_pad)          fused conv weights, tap-major rows (kw outer, kh inner)
    # gamma/beta_ref: (1, Cout_pad)         BN affine params (zero-padded)
    # wfc_ref  : (Cout_pad, Cls_pad)        FC weights; bfc_ref: (1, Cls_pad)
    # out_ref  : (N, Cls_pad)               logits (lane-padded), resident across the grid
    # xp_ref   : (NB, H+2, 2*_PADW+W, Cin)  zero-halo workspace (VMEM scratch)
    # conv_ref : (N, H*W, Cout_pad)         conv output, resident across the grid
    # sum_ref/ssq_ref: (1, Cout_pad)        one-pass BN partial sums
    NB, H, W, Cin = x_ref.shape
    HW = H * W
    M = NB * HW
    cout_pad = wconv_ref.shape[1]
    b = pl.program_id(0)
    nsteps = pl.num_programs(0)

    # ---- init (first grid step): zero the halo workspace + BN partial sums ----
    @pl.when(b == 0)
    def _init():
        xp_ref[...] = jnp.zeros_like(xp_ref)
        sum_ref[...] = jnp.zeros_like(sum_ref)
        ssq_ref[...] = jnp.zeros_like(ssq_ref)

    # ---- place the tile inside the zero halo (sublane-aligned store; borders stay zero) ----
    xp_ref[:, 1:H + 1, _PADW:_PADW + W, :] = x_ref[...]

    # ---- im2col: 3 sublane-shifted reads (kw); kh shifts are free untiled-row slices ----
    cols = []
    for kw in range(3):
        c0 = _PADW - 1 + kw
        xkw = xp_ref[:, :, c0:c0 + W, :]                     # (NB, H+2, W, Cin)
        for kh in range(3):
            cols.append(xkw[:, kh:kh + H].reshape(M, Cin))   # (M, Cin), lane-aligned piece
    col = jnp.concatenate(cols, axis=1)                      # (M, 9*Cin)

    # ---- fused 3x3 conv: one MXU matmul, K = 9*Cin, lane-dense Cout ----
    conv = jnp.dot(col, wconv_ref[...], preferred_element_type=jnp.float32)   # (M, Cout_pad)

    # stash conv tile (resident scratch) + accumulate one-pass BN statistics
    conv_ref[pl.ds(b * NB, NB)] = conv.reshape(NB, HW, cout_pad)
    sum_ref[...] += jnp.sum(conv, axis=0, keepdims=True)
    ssq_ref[...] += jnp.sum(conv * conv, axis=0, keepdims=True)

    # ---- finalize: BN scale/shift + ReLU + global-avg-pool + FC, fused in-register ----
    @pl.when(b == nsteps - 1)
    def _finalize():
        n_total = conv_ref.shape[0] * HW                     # N * H * W (static)
        inv_n = jnp.float32(1.0 / n_total)
        mean = sum_ref[...] * inv_n                                    # (1, Cout_pad)
        var = ssq_ref[...] * inv_n - mean * mean                       # biased (train-mode) var
        scale = gamma_ref[...] * jax.lax.rsqrt(var + 1e-5)             # tiny vector -> EUP
        shift = beta_ref[...] - mean * scale
        acts = conv_ref[...]                                           # (N, HW, Cout_pad)
        y = jnp.maximum(acts * scale + shift, 0.0)                     # BN + ReLU, one pass
        pooled = jnp.mean(y, axis=1)                                   # (N, Cout_pad)
        out_ref[...] = (jnp.dot(pooled, wfc_ref[...],
                                preferred_element_type=jnp.float32)
                        + bfc_ref[...])


def earlyexit_ramp_forward(x_nchw, params, *, batch_tile=1):
    """x_nchw: (N, Cin, H, W) float32. Returns (N, num_classes) float32 logits."""
    N, Cin, H, W = x_nchw.shape
    conv_w = params["conv_w"]          # (Cout, Cin, 3, 3) torch layout
    gamma = params["bn_gamma"]         # (Cout,)
    beta = params["bn_beta"]           # (Cout,)
    fc_w = params["fc_w"]              # (num_classes, Cout) torch layout
    fc_b = params["fc_b"]              # (num_classes,)
    Cout = conv_w.shape[0]
    num_classes = fc_w.shape[0]

    NB = batch_tile
    assert N % NB == 0, "batch must be divisible by batch_tile"
    cout_pad = ((Cout + _LANES - 1) // _LANES) * _LANES
    cls_pad = ((num_classes + _LANES - 1) // _LANES) * _LANES
    # NOTE: Cin is expected to be a multiple of 128 (true for the module's num_feature=1024)
    # so the im2col lane-concat pieces are 128-aligned.

    # ---- glue: NCHW -> NHWC (the only full copy of x; no wrapper-side spatial pad) ----
    x_nhwc = jnp.transpose(x_nchw, (0, 2, 3, 1)).astype(jnp.float32)

    # ---- weight repack: (Cout,Cin,3,3) -> (9*Cin, Cout_pad); tap order kw-major / kh-inner
    #      matches the kernel's im2col concat order; Cout/num_classes zero-padded to 128. ----
    wconv = jnp.transpose(conv_w.astype(jnp.float32), (3, 2, 1, 0)).reshape(9 * Cin, Cout)
    wconv_p = jnp.zeros((9 * Cin, cout_pad), jnp.float32).at[:, :Cout].set(wconv)
    gamma_p = jnp.zeros((1, cout_pad), jnp.float32).at[:, :Cout].set(gamma.astype(jnp.float32))
    beta_p = jnp.zeros((1, cout_pad), jnp.float32).at[:, :Cout].set(beta.astype(jnp.float32))
    wfc_p = jnp.zeros((cout_pad, cls_pad), jnp.float32).at[:Cout, :num_classes].set(
        jnp.transpose(fc_w, (1, 0)).astype(jnp.float32))
    bfc_p = jnp.zeros((1, cls_pad), jnp.float32).at[:, :num_classes].set(fc_b.astype(jnp.float32))
    # conv bias is intentionally NOT passed: BN's batch-mean subtraction cancels it exactly.

    grid = (N // NB,)
    flops = 2 * N * H * W * (9 * Cin) * cout_pad + 2 * N * cout_pad * cls_pad
    bytes_accessed = 4 * (x_nhwc.size + wconv_p.size + wfc_p.size + N * cls_pad + 4 * cout_pad)

    out_pad = pl.pallas_call(
        _earlyexit_kernel,
        out_shape=jax.ShapeDtypeStruct((N, cls_pad), jnp.float32),
        grid_spec=pltpu.PrefetchScalarGridSpec(
            num_scalar_prefetch=0,
            grid=grid,
            in_specs=[
                pl.BlockSpec((NB, H, W, Cin), lambda b: (b, 0, 0, 0)),       # batch tile
                pl.BlockSpec((9 * Cin, cout_pad), lambda b: (0, 0)),         # fused conv weights
                pl.BlockSpec((1, cout_pad), lambda b: (0, 0)),               # gamma
                pl.BlockSpec((1, cout_pad), lambda b: (0, 0)),               # beta
                pl.BlockSpec((cout_pad, cls_pad), lambda b: (0, 0)),         # fc weights
                pl.BlockSpec((1, cls_pad), lambda b: (0, 0)),                # fc bias
            ],
            out_specs=pl.BlockSpec((N, cls_pad), lambda b: (0, 0)),          # resident output
            scratch_shapes=[
                pltpu.VMEM((NB, H + 2, 2 * _PADW + W, Cin), jnp.float32),    # halo workspace
                pltpu.VMEM((N, H * W, cout_pad), jnp.float32),               # resident conv out
                pltpu.VMEM((1, cout_pad), jnp.float32),                      # BN sum
                pltpu.VMEM((1, cout_pad), jnp.float32),                      # BN sum of squares
            ],
        ),
        compiler_params=pltpu.CompilerParams(
            dimension_semantics=("arbitrary",),    # stats / conv scratch accumulate across it
            vmem_limit_bytes=32 * 1024 * 1024,     # fits v5e/v6e/v7x scoped-VMEM budgets
        ),
        cost_estimate=pl.CostEstimate(flops=flops, transcendentals=cout_pad,
                                      bytes_accessed=bytes_accessed),
    )(x_nhwc, wconv_p, gamma_p, beta_p, wfc_p, bfc_p)

    return out_pad[:, :num_classes]


def _reference_forward(x_nchw, params):
    """Independent pure-JAX reference (matches PyTorch train-mode forward, incl. conv bias)."""
    conv_w, conv_b = params["conv_w"], params["conv_b"]
    gamma, beta = params["bn_gamma"], params["bn_beta"]
    fc_w, fc_b = params["fc_w"], params["fc_b"]
    y = jax.lax.conv_general_dilated(
        x_nchw, conv_w, window_strides=(1, 1), padding=((1, 1), (1, 1)),
        dimension_numbers=("NCHW", "OIHW", "NCHW"))
    y = y + conv_b[None, :, None, None]
    mean = jnp.mean(y, axis=(0, 2, 3), keepdims=True)
    var = jnp.mean((y - mean) ** 2, axis=(0, 2, 3), keepdims=True)
    y = (y - mean) / jnp.sqrt(var + 1e-5)
    y = y * gamma[None, :, None, None] + beta[None, :, None, None]
    y = jnp.maximum(y, 0.0)
    pooled = jnp.mean(y, axis=(2, 3))
    return pooled @ fc_w.T + fc_b


if __name__ == "__main__":
    # Small shapes consistent with the module: num_feature -> num_feature/2 conv, FC to 10.
    # Cin=128 keeps the demo lane-aligned, matching the real module (num_feature=1024).
    N, Cin, H, W = 2, 128, 8, 8
    Cout = Cin // 2
    num_classes = 10

    key = jax.random.PRNGKey(0)
    kx, kcw, kcb, kfw, kfb = jax.random.split(key, 5)

    x = jax.random.normal(kx, (N, Cin, H, W), dtype=jnp.float32)
    params = {
        "conv_w": 0.05 * jax.random.normal(kcw, (Cout, Cin, 3, 3), dtype=jnp.float32),
        "conv_b": 0.01 * jax.random.normal(kcb, (Cout,), dtype=jnp.float32),
        "bn_gamma": jnp.ones((Cout,), jnp.float32),     # PyTorch BN default init
        "bn_beta": jnp.zeros((Cout,), jnp.float32),
        "fc_w": 0.05 * jax.random.normal(kfw, (num_classes, Cout), dtype=jnp.float32),
        "fc_b": 0.01 * jax.random.normal(kfb, (num_classes,), dtype=jnp.float32),
    }

    out = jax.block_until_ready(earlyexit_ramp_forward(x, params, batch_tile=1))
    ref = jax.block_until_ready(_reference_forward(x, params))

    assert out.shape == (N, num_classes)
    assert jnp.allclose(out, ref, atol=1e-4, rtol=1e-4), "mismatch vs reference"

    print("KERNEL_OK")
</pallas_src>

<mosaic_0001>
module attributes {stable_mosaic.version = 11 : i64} {
  func.func @_earlyexit_kernel(%arg0: i32, %arg1: memref<1x8x8x128xf32, #tpu.memory_space<vmem>>, %arg2: memref<1152x128xf32, #tpu.memory_space<vmem>>, %arg3: memref<1x128xf32, #tpu.memory_space<vmem>>, %arg4: memref<1x128xf32, #tpu.memory_space<vmem>>, %arg5: memref<128x128xf32, #tpu.memory_space<vmem>>, %arg6: memref<1x128xf32, #tpu.memory_space<vmem>>, %arg7: memref<2x128xf32, #tpu.memory_space<vmem>>, %arg8: memref<1x10x24x128xf32, #tpu.memory_space<vmem>>, %arg9: memref<2x64x128xf32, #tpu.memory_space<vmem>>, %arg10: memref<1x128xf32, #tpu.memory_space<vmem>>, %arg11: memref<1x128xf32, #tpu.memory_space<vmem>>) attributes {dimension_semantics = [#tpu.dimension_semantics<arbitrary>], iteration_bounds = array<i64: 2>, scalar_prefetch = 0 : i64, scratch_operands = 4 : i64, tpu.core_type = #tpu.core_type<tc>, window_params = [{transform_indices = @transform_0, window_bounds = array<i64: 1, 8, 8, 128>}, {pipeline_mode = #tpu.pipeline_mode<synchronous>, transform_indices = @transform_1, window_bounds = array<i64: 1152, 128>}, {pipeline_mode = #tpu.pipeline_mode<synchronous>, transform_indices = @transform_2, window_bounds = array<i64: 1, 128>}, {pipeline_mode = #tpu.pipeline_mode<synchronous>, transform_indices = @transform_3, window_bounds = array<i64: 1, 128>}, {pipeline_mode = #tpu.pipeline_mode<synchronous>, transform_indices = @transform_4, window_bounds = array<i64: 128, 128>}, {pipeline_mode = #tpu.pipeline_mode<synchronous>, transform_indices = @transform_5, window_bounds = array<i64: 1, 128>}, {pipeline_mode = #tpu.pipeline_mode<synchronous>, transform_indices = @transform_6, window_bounds = array<i64: 2, 128>}]} {
    %c0_i32 = arith.constant 0 : i32
    %0 = arith.cmpi eq, %arg0, %c0_i32 : i32
    %1 = arith.extui %0 : i1 to i32
    %c0_i32_0 = arith.constant 0 : i32
    %2 = arith.cmpi ne, %1, %c0_i32_0 : i32
    scf.if %2 {
      %cst_32 = arith.constant 0.000000e+00 : f32
      %47 = vector.broadcast %cst_32 : f32 to vector<1x10x24x128xf32>
      %c0_33 = arith.constant 0 : index
      %c0_34 = arith.constant 0 : index
      %c0_35 = arith.constant 0 : index
      %c0_36 = arith.constant 0 : index
      %48 = vector.load %arg8[%c0_33, %c0_34, %c0_35, %c0_36] : memref<1x10x24x128xf32, #tpu.memory_space<vmem>>, vector<1x10x24x128xf32>
      tpu.vector_store %arg8[%c0_33, %c0_34, %c0_35, %c0_36], %47 {strides = array<i32>} : memref<1x10x24x128xf32, #tpu.memory_space<vmem>>, vector<1x10x24x128xf32>,
      %cst_37 = arith.constant 0.000000e+00 : f32
      %49 = vector.broadcast %cst_37 : f32 to vector<1x128xf32>
      %c0_38 = arith.constant 0 : index
      %c0_39 = arith.constant 0 : index
      %50 = vector.load %arg10[%c0_38, %c0_39] : memref<1x128xf32, #tpu.memory_space<vmem>>, vector<1x128xf32>
      tpu.vector_store %arg10[%c0_38, %c0_39], %49 {strides = array<i32>} : memref<1x128xf32, #tpu.memory_space<vmem>>, vector<1x128xf32>,
      %cst_40 = arith.constant 0.000000e+00 : f32
      %51 = vector.broadcast %cst_40 : f32 to vector<1x128xf32>
      %c0_41 = arith.constant 0 : index
      %c0_42 = arith.constant 0 : index
      %52 = vector.load %arg11[%c0_41, %c0_42] : memref<1x128xf32, #tpu.memory_space<vmem>>, vector<1x128xf32>
      tpu.vector_store %arg11[%c0_41, %c0_42], %51 {strides = array<i32>} : memref<1x128xf32, #tpu.memory_space<vmem>>, vector<1x128xf32>,
    } else {
    }
    %c0 = arith.constant 0 : index
    %c0_1 = arith.constant 0 : index
    %c0_2 = arith.constant 0 : index
    %c0_3 = arith.constant 0 : index
    %3 = vector.load %arg1[%c0, %c0_1, %c0_2, %c0_3] : memref<1x8x8x128xf32, #tpu.memory_space<vmem>>, vector<1x8x8x128xf32>
    %c0_4 = arith.constant 0 : index
    %c1 = arith.constant 1 : index
    %c8 = arith.constant 8 : index
    %c0_5 = arith.constant 0 : index
    %4 = vector.load %arg8[%c0_4, %c1, %c8, %c0_5] : memref<1x10x24x128xf32, #tpu.memory_space<vmem>>, vector<1x8x8x128xf32>
    tpu.vector_store %arg8[%c0_4, %c1, %c8, %c0_5], %3 {strides = array<i32>} : memref<1x10x24x128xf32, #tpu.memory_space<vmem>>, vector<1x8x8x128xf32>,
    %c0_6 = arith.constant 0 : index
    %c0_7 = arith.constant 0 : index
    %c7 = arith.constant 7 : index
    %c0_8 = arith.constant 0 : index
    %5 = vector.load %arg8[%c0_6, %c0_7, %c7, %c0_8] : memref<1x10x24x128xf32, #tpu.memory_space<vmem>>, vector<1x10x8x128xf32>
    %6 = vector.extract_strided_slice %5 {offsets = [0, 0, 0, 0], sizes = [1, 8, 8, 128], strides = [1, 1, 1, 1]} : vector<1x10x8x128xf32> to vector<1x8x8x128xf32>
    %7 = vector.shape_cast %6 : vector<1x8x8x128xf32> to vector<64x128xf32>
    %8 = vector.extract_strided_slice %5 {offsets = [0, 1, 0, 0], sizes = [1, 8, 8, 128], strides = [1, 1, 1, 1]} : vector<1x10x8x128xf32> to vector<1x8x8x128xf32>
    %9 = vector.shape_cast %8 : vector<1x8x8x128xf32> to vector<64x128xf32>
    %10 = vector.extract_strided_slice %5 {offsets = [0, 2, 0, 0], sizes = [1, 8, 8, 128], strides = [1, 1, 1, 1]} : vector<1x10x8x128xf32> to vector<1x8x8x128xf32>
    %11 = vector.shape_cast %10 : vector<1x8x8x128xf32> to vector<64x128xf32>
    %c0_9 = arith.constant 0 : index
    %c0_10 = arith.constant 0 : index
    %c8_11 = arith.constant 8 : index
    %c0_12 = arith.constant 0 : index
    %12 = vector.load %arg8[%c0_9, %c0_10, %c8_11, %c0_12] : memref<1x10x24x128xf32, #tpu.memory_space<vmem>>, vector<1x10x8x128xf32>
    %13 = vector.extract_strided_slice %12 {offsets = [0, 0, 0, 0], sizes = [1, 8, 8, 128], strides = [1, 1, 1, 1]} : vector<1x10x8x128xf32> to vector<1x8x8x128xf32>
    %14 = vector.shape_cast %13 : vector<1x8x8x128xf32> to vector<64x128xf32>
    %15 = vector.extract_strided_slice %12 {offsets = [0, 1, 0, 0], sizes = [1, 8, 8, 128], strides = [1, 1, 1, 1]} : vector<1x10x8x128xf32> to vector<1x8x8x128xf32>
    %16 = vector.shape_cast %15 : vector<1x8x8x128xf32> to vector<64x128xf32>
    %17 = vector.extract_strided_slice %12 {offsets = [0, 2, 0, 0], sizes = [1, 8, 8, 128], strides = [1, 1, 1, 1]} : vector<1x10x8x128xf32> to vector<1x8x8x128xf32>
    %18 = vector.shape_cast %17 : vector<1x8x8x128xf32> to vector<64x128xf32>
    %c0_13 = arith.constant 0 : index
    %c0_14 = arith.constant 0 : index
    %c9 = arith.constant 9 : index
    %c0_15 = arith.constant 0 : index
    %19 = vector.load %arg8[%c0_13, %c0_14, %c9, %c0_15] : memref<1x10x24x128xf32, #tpu.memory_space<vmem>>, vector<1x10x8x128xf32>
    %20 = vector.extract_strided_slice %19 {offsets = [0, 0, 0, 0], sizes = [1, 8, 8, 128], strides = [1, 1, 1, 1]} : vector<1x10x8x128xf32> to vector<1x8x8x128xf32>
    %21 = vector.shape_cast %20 : vector<1x8x8x128xf32> to vector<64x128xf32>
    %22 = vector.extract_strided_slice %19 {offsets = [0, 1, 0, 0], sizes = [1, 8, 8, 128], strides = [1, 1, 1, 1]} : vector<1x10x8x128xf32> to vector<1x8x8x128xf32>
    %23 = vector.shape_cast %22 : vector<1x8x8x128xf32> to vector<64x128xf32>
    %24 = vector.extract_strided_slice %19 {offsets = [0, 2, 0, 0], sizes = [1, 8, 8, 128], strides = [1, 1, 1, 1]} : vector<1x10x8x128xf32> to vector<1x8x8x128xf32>
    %25 = vector.shape_cast %24 : vector<1x8x8x128xf32> to vector<64x128xf32>
    %26 = tpu.concatenate %7, %9, %11, %14, %16, %18, %21, %23, %25 in 1 : vector<64x128xf32>, vector<64x128xf32>, vector<64x128xf32>, vector<64x128xf32>, vector<64x128xf32>, vector<64x128xf32>, vector<64x128xf32>, vector<64x128xf32>, vector<64x128xf32> -> vector<64x1152xf32>
    %c0_16 = arith.constant 0 : index
    %c0_17 = arith.constant 0 : index
    %27 = vector.load %arg2[%c0_16, %c0_17] : memref<1152x128xf32, #tpu.memory_space<vmem>>, vector<1152x128xf32>
    %cst = arith.constant dense<0.000000e+00> : vector<64x128xf32>
    %28 = tpu.matmul %26, %27, %cst {dimension_numbers = #tpu.dot_dimension_numbers<[1], [0], [0], [1], [0, 0, 1, 1], [], []>} : vector<64x1152xf32>, vector<1152x128xf32>, vector<64x128xf32> -> vector<64x128xf32>
    %29 = vector.shape_cast %28 : vector<64x128xf32> to vector<1x64x128xf32>
    %c1_i32 = arith.constant 1 : i32
    %30 = arith.muli %arg0, %c1_i32 : i32
    %31 = arith.index_cast %30 : i32 to index
    %c0_18 = arith.constant 0 : index
    %c0_19 = arith.constant 0 : index
    %32 = vector.load %arg9[%31, %c0_18, %c0_19] : memref<2x64x128xf32, #tpu.memory_space<vmem>>, vector<1x64x128xf32>
    tpu.vector_store %arg9[%31, %c0_18, %c0_19], %29 {strides = array<i32>} : memref<2x64x128xf32, #tpu.memory_space<vmem>>, vector<1x64x128xf32>,
    %c0_20 = arith.constant 0 : index
    %c0_21 = arith.constant 0 : index
    %33 = vector.load %arg10[%c0_20, %c0_21] : memref<1x128xf32, #tpu.memory_space<vmem>>, vector<1x128xf32>
    %cst_22 = arith.constant dense<0.000000e+00> : vector<128xf32>
    %34 = vector.multi_reduction <add>, %28, %cst_22 [0] : vector<64x128xf32> to vector<128xf32>
    %35 = vector.shape_cast %34 : vector<128xf32> to vector<1x128xf32>
    %36 = arith.addf %33, %35 : vector<1x128xf32>
    %c0_23 = arith.constant 0 : index
    %c0_24 = arith.constant 0 : index
    %37 = vector.load %arg10[%c0_23, %c0_24] : memref<1x128xf32, #tpu.memory_space<vmem>>, vector<1x128xf32>
    tpu.vector_store %arg10[%c0_23, %c0_24], %36 {strides = array<i32>} : memref<1x128xf32, #tpu.memory_space<vmem>>, vector<1x128xf32>,
    %c0_25 = arith.constant 0 : index
    %c0_26 = arith.constant 0 : index
    %38 = vector.load %arg11[%c0_25, %c0_26] : memref<1x128xf32, #tpu.memory_space<vmem>>, vector<1x128xf32>
    %39 = arith.mulf %28, %28 : vector<64x128xf32>
    %cst_27 = arith.constant dense<0.000000e+00> : vector<128xf32>
    %40 = vector.multi_reduction <add>, %39, %cst_27 [0] : vector<64x128xf32> to vector<128xf32>
    %41 = vector.shape_cast %40 : vector<128xf32> to vector<1x128xf32>
    %42 = arith.addf %38, %41 : vector<1x128xf32>
    %c0_28 = arith.constant 0 : index
    %c0_29 = arith.constant 0 : index
    %43 = vector.load %arg11[%c0_28, %c0_29] : memref<1x128xf32, #tpu.memory_space<vmem>>, vector<1x128xf32>
    tpu.vector_store %arg11[%c0_28, %c0_29], %42 {strides = array<i32>} : memref<1x128xf32, #tpu.memory_space<vmem>>, vector<1x128xf32>,
    %c1_i32_30 = arith.constant 1 : i32
    %44 = arith.cmpi eq, %arg0, %c1_i32_30 : i32
    %45 = arith.extui %44 : i1 to i32
    %c0_i32_31 = arith.constant 0 : i32
    %46 = arith.cmpi ne, %45, %c0_i32_31 : i32
    scf.if %46 {
      %c0_32 = arith.constant 0 : index
      %c0_33 = arith.constant 0 : index
      %47 = vector.load %arg10[%c0_32, %c0_33] : memref<1x128xf32, #tpu.memory_space<vmem>>, vector<1x128xf32>
      %cst_34 = arith.constant 7.812500e-03 : f32
      %48 = vector.broadcast %cst_34 : f32 to vector<1x128xf32>
      %49 = arith.mulf %47, %48 : vector<1x128xf32>
      %c0_35 = arith.constant 0 : index
      %c0_36 = arith.constant 0 : index
      %50 = vector.load %arg11[%c0_35, %c0_36] : memref<1x128xf32, #tpu.memory_space<vmem>>, vector<1x128xf32>
      %cst_37 = arith.constant 7.812500e-03 : f32
      %51 = vector.broadcast %cst_37 : f32 to vector<1x128xf32>
      %52 = arith.mulf %50, %51 : vector<1x128xf32>
      %53 = arith.mulf %49, %49 : vector<1x128xf32>
      %54 = arith.subf %52, %53 : vector<1x128xf32>
      %c0_38 = arith.constant 0 : index
      %c0_39 = arith.constant 0 : index
      %55 = vector.load %arg3[%c0_38, %c0_39] : memref<1x128xf32, #tpu.memory_space<vmem>>, vector<1x128xf32>
      %cst_40 = arith.constant 9.99999974E-6 : f32
      %56 = vector.broadcast %cst_40 : f32 to vector<1x128xf32>
      %57 = arith.addf %54, %56 : vector<1x128xf32>
      %58 = math.rsqrt %57 : vector<1x128xf32>
      %59 = arith.mulf %55, %58 : vector<1x128xf32>
      %c0_41 = arith.constant 0 : index
      %c0_42 = arith.constant 0 : index
      %60 = vector.load %arg4[%c0_41, %c0_42] : memref<1x128xf32, #tpu.memory_space<vmem>>, vector<1x128xf32>
      %61 = arith.mulf %49, %59 : vector<1x128xf32>
      %62 = arith.subf %60, %61 : vector<1x128xf32>
      %c0_43 = arith.constant 0 : index
      %c0_44 = arith.constant 0 : index
      %c0_45 = arith.constant 0 : index
      %63 = vector.load %arg9[%c0_43, %c0_44, %c0_45] : memref<2x64x128xf32, #tpu.memory_space<vmem>>, vector<2x64x128xf32>
      %64 = vector.shape_cast %59 : vector<1x128xf32> to vector<1x1x128xf32>
      %65 = vector.broadcast %64 : vector<1x1x128xf32> to vector<2x64x128xf32>
      %66 = arith.mulf %63, %65 : vector<2x64x128xf32>
      %67 = vector.shape_cast %62 : vector<1x128xf32> to vector<1x1x128xf32>
      %68 = vector.broadcast %67 : vector<1x1x128xf32> to vector<2x64x128xf32>
      %69 = arith.addf %66, %68 : vector<2x64x128xf32>
      %cst_46 = arith.constant 0.000000e+00 : f32
      %70 = vector.broadcast %cst_46 : f32 to vector<2x64x128xf32>
      %71 = arith.maximumf %69, %70 : vector<2x64x128xf32>
      %cst_47 = arith.constant dense<0.000000e+00> : vector<2x128xf32>
      %72 = vector.multi_reduction <add>, %71, %cst_47 [1] : vector<2x64x128xf32> to vector<2x128xf32>
      %cst_48 = arith.constant 6.400000e+01 : f32
      %73 = vector.broadcast %cst_48 : f32 to vector<2x128xf32>
      %74 = arith.divf %72, %73 : vector<2x128xf32>
      %c0_49 = arith.constant 0 : index
      %c0_50 = arith.constant 0 : index
      %75 = vector.load %arg5[%c0_49, %c0_50] : memref<128x128xf32, #tpu.memory_space<vmem>>, vector<128x128xf32>
      %cst_51 = arith.constant dense<0.000000e+00> : vector<2x128xf32>
      %76 = tpu.matmul %74, %75, %cst_51 {dimension_numbers = #tpu.dot_dimension_numbers<[1], [0], [0], [1], [0, 0, 1, 1], [], []>} : vector<2x128xf32>, vector<128x128xf32>, vector<2x128xf32> -> vector<2x128xf32>
      %c0_52 = arith.constant 0 : index
      %c0_53 = arith.constant 0 : index
      %77 = vector.load %arg6[%c0_52, %c0_53] : memref<1x128xf32, #tpu.memory_space<vmem>>, vector<1x128xf32>
      %78 = vector.broadcast %77 : vector<1x128xf32> to vector<2x128xf32>
      %79 = arith.addf %76, %78 : vector<2x128xf32>
      %c0_54 = arith.constant 0 : index
      %c0_55 = arith.constant 0 : index
      %80 = vector.load %arg7[%c0_54, %c0_55] : memref<2x128xf32, #tpu.memory_space<vmem>>, vector<2x128xf32>
      tpu.vector_store %arg7[%c0_54, %c0_55], %79 {strides = array<i32>} : memref<2x128xf32, #tpu.memory_space<vmem>>, vector<2x128xf32>,
    } else {
    }
    return
  }
  func.func @transform_0(%arg0: i32) -> (i32, i32, i32, i32) {
    %c0_i32 = arith.constant 0 : i32
    %c0_i32_0 = arith.constant 0 : i32
    %c0_i32_1 = arith.constant 0 : i32
    %c0_i32_2 = arith.constant 0 : i32
    return %arg0, %c0_i32, %c0_i32_0, %c0_i32_1 : i32, i32, i32, i32
  }
  func.func @transform_1(%arg0: i32) -> (i32, i32) {
    %c0_i32 = arith.constant 0 : i32
    %c0_i32_0 = arith.constant 0 : i32
    %c0_i32_1 = arith.constant 0 : i32
    return %c0_i32, %c0_i32_0 : i32, i32
  }
  func.func @transform_2(%arg0: i32) -> (i32, i32) {
    %c0_i32 = arith.constant 0 : i32
    %c0_i32_0 = arith.constant 0 : i32
    %c0_i32_1 = arith.constant 0 : i32
    return %c0_i32, %c0_i32_0 : i32, i32
  }
  func.func @transform_3(%arg0: i32) -> (i32, i32) {
    %c0_i32 = arith.constant 0 : i32
    %c0_i32_0 = arith.constant 0 : i32
    %c0_i32_1 = arith.constant 0 : i32
    return %c0_i32, %c0_i32_0 : i32, i32
  }
  func.func @transform_4(%arg0: i32) -> (i32, i32) {
    %c0_i32 = arith.constant 0 : i32
    %c0_i32_0 = arith.constant 0 : i32
    %c0_i32_1 = arith.constant 0 : i32
    return %c0_i32, %c0_i32_0 : i32, i32
  }
  func.func @transform_5(%arg0: i32) -> (i32, i32) {
    %c0_i32 = arith.constant 0 : i32
    %c0_i32_0 = arith.constant 0 : i32
    %c0_i32_1 = arith.constant 0 : i32
    return %c0_i32, %c0_i32_0 : i32, i32
  }
  func.func @transform_6(%arg0: i32) -> (i32, i32) {
    %c0_i32 = arith.constant 0 : i32
    %c0_i32_0 = arith.constant 0 : i32
    %c0_i32_1 = arith.constant 0 : i32
    return %c0_i32, %c0_i32_0 : i32, i32
  }
}

</mosaic_0001>

<llo_original>
// kernel: tpu_custom_call.1
$region0: #{tpu_custom_call.1}
  #allocation0 [shape = 'u32[]', space=smem, size = 0x4, offset = 0x4, fixed_abs, tag = 'smem constant byte address 0x4 - core index']
  #allocation1 [shape = 'u32[72,128]{1,0:T(1,128)}', space=vmem, size = 0x9000, scoped, tag = 'internal scratch']
  #allocation2 [shape = 'f32[1,10,24,128]{3,2,1,0:T(8,128)}', space=vmem, size = 0x1e000, scoped, tag = 'scratch operand']
  #allocation3 [shape = 'f32[2,64,128]{2,1,0:T(8,128)}', space=vmem, size = 0x10000, scoped, tag = 'scratch operand']
  #allocation4 [shape = 'f32[1,128]{1,0:T(1,128)}', space=vmem, size = 0x200, scoped, tag = 'scratch operand']
  #allocation5 [shape = 'f32[1,128]{1,0:T(1,128)}', space=vmem, size = 0x200, scoped, tag = 'scratch operand']
  %s0 = inlined_call_operand.hbm [shape: f32[2,8,8,128], index: 0, kind: input, shape index: {}]
  %s1 = inlined_call_operand.hbm [shape: f32[1152,128], index: 1, kind: input, shape index: {}]
  %s2 = inlined_call_operand.vmem [shape: f32[1,128], index: 2, kind: input, shape index: {}]
  %s3 = inlined_call_operand.vmem [shape: f32[1,128], index: 3, kind: input, shape index: {}]
  %s4 = inlined_call_operand.hbm [shape: f32[128,128], index: 4, kind: input, shape index: {}]
  %s5 = inlined_call_operand.vmem [shape: f32[1,128], index: 5, kind: input, shape index: {}]
  %s6 = inlined_call_operand.hbm [shape: f32[2,128], index: 6, kind: output, shape index: {}]
  %s7 = sld [smem:[#allocation0]]
  $region77: #{tpu_custom_call.1} parent=0
    _
  %s9 = ssub.s32 1, %s7
  %s10 = scalar_select 0, %s9, %s7
  $region1: #{tpu_custom_call.1} parent=0
    #allocation6 [shape = 'u8[65536]{0}', space=vmem, size = 0x10000, scoped, tag = 'input window, operand 0']
    #allocation7 [shape = 's32[2]{0}', space=sflag, size = 0x8, scoped, tag = 'scoped memory for tpu_custom_call.1']
    #allocation8 [shape = 's32[2]{0}', space=sflag, size = 0x8, scoped, tag = 'scoped memory for tpu_custom_call.1']
    #allocation9 [shape = 'u8[589824]{0}', space=vmem, size = 0x90000, scoped, tag = 'input window, operand 1, single buffered']
    #allocation10 [shape = 's32[1]{0}', space=sflag, size = 0x4, scoped, tag = 'scoped memory for tpu_custom_call.1']
    #allocation11 [shape = 'u8[65536]{0}', space=vmem, size = 0x10000, scoped, tag = 'input window, operand 4, single buffered']
    #allocation12 [shape = 'u8[1024]{0}', space=vmem, size = 0x400, scoped, tag = 'output window, operand 0, single buffered']
    %11 = vsyncpa [#allocation7], 0
    %s12 = scalar_lea.sflag [#allocation7], 1
    %13 = vsyncpa %s12, 0
    %14 = vsyncpa [#allocation10], 0
    %15 = vsyncpa [#allocation8], 0
    loop: start=0, step=1, limit=4
    $region2: #{tpu_custom_call.1} parent=1 // loop_pre_header
      _
    $region3: #{tpu_custom_call.1} parent=1 // loop_header
      %s17 = sphi 0, %s21
      %p18 = scmp.ge.s32.totalorder %s17, 4
      %s27 = sphi 0, %s29
      %s30 = sphi 0, %s27
      %s31 = sphi 0, %s30
      %s47 = sphi 0, %s31
      %s51 = sphi 0, %s51
      %s53 = sphi 0, %s51
      %s54 = sphi 0, %s53
      %s68 = sphi 0, %s54
      %s72 = sphi 0, %s72
      %s74 = sphi 0, %s72
      %s75 = sphi 0, %s74
      %s89 = sphi 0, %s75
      %s93 = sphi 0, %s93
      %s95 = sphi 0, %s93
      %s96 = sphi 0, %s95
      %s110 = sphi 0, %s96
      %s114 = sphi 0, %s114
      %s116 = sphi 0, %s114
      %s117 = sphi 0, %s116
      %s131 = sphi 0, %s117
      %s135 = sphi 0, %s135
      %s137 = sphi 0, %s135
      %s138 = sphi 0, %s137
      %s152 = sphi 0, %s138
      %s156 = sphi 0, %s156
      %s158 = sphi 0, %s156
      %s159 = sphi 0, %s158
      %s173 = sphi 0, %s159
    $region4: #{tpu_custom_call.1} parent=1 // loop_header_branch
      %20 = sbr.rel (%p18) target = $region8
    $region5: #{tpu_custom_call.1} parent=1 // loop_body
      %s22 = ssub.s32 %s17, 1
      %s23 = ssub.s32 %s17, 2
      %s24 = sadd.s32 %s17, 1
      %s25 = ssub.s32 %s17, %s24
      %p26 = scmp.eq.s32.totalorder %s25, 0
      %s28 = sadd.s32 %s27, 1
      %s29 = scalar_select %p26, %s27, %s28
      %p32 = pneg %p26
      %p33 = scmp.eq.s32.totalorder %s17, 1
      %p34 = por %p32, %p33
      %p35 = scmp.ne.s32.totalorder %s27, %s30
      %p36 = scmp.eq.s32.totalorder %s17, 0
      %p37 = por %p35, %p36
      %p38 = scmp.ne.s32.totalorder %s27, %s30
      %p39 = scmp.eq.s32.totalorder %s22, 1
      %p40 = por %p38, %p39
      %p41 = scmp.ne.s32.totalorder %s30, %s31
      %p42 = scmp.eq.s32.totalorder %s22, 0
      %p43 = por %p41, %p42
      %p44 = scmp.ne.s32.totalorder %s30, %s31
      %p45 = scmp.eq.s32.totalorder %s23, 1
      %p46 = por %p44, %p45
      %p48 = scmp.ne.s32.totalorder %s31, %s47
      %p49 = scmp.eq.s32.totalorder %s23, 0
      %p50 = por %p48, %p49
      %s52 = sadd.s32 %s51, 1
      %p55 = scmp.eq.s32.totalorder %s17, 1
      %p56 = scmp.ne.s32.totalorder %s51, %s53
      %p57 = scmp.eq.s32.totalorder %s17, 0
      %p58 = por %p56, %p57
      %p59 = scmp.ne.s32.totalorder %s51, %s53
      %p60 = scmp.eq.s32.totalorder %s22, 1
      %p61 = por %p59, %p60
      %p62 = scmp.ne.s32.totalorder %s53, %s54
      %p63 = scmp.eq.s32.totalorder %s22, 0
      %p64 = por %p62, %p63
      %p65 = scmp.ne.s32.totalorder %s53, %s54
      %p66 = scmp.eq.s32.totalorder %s23, 1
      %p67 = por %p65, %p66
      %p69 = scmp.ne.s32.totalorder %s54, %s68
      %p70 = scmp.eq.s32.totalorder %s23, 0
      %p71 = por %p69, %p70
      %s73 = sadd.s32 %s72, 1
      %p76 = scmp.eq.s32.totalorder %s17, 1
      %p77 = scmp.ne.s32.totalorder %s72, %s74
      %p78 = scmp.eq.s32.totalorder %s17, 0
      %p79 = por %p77, %p78
      %p80 = scmp.ne.s32.totalorder %s72, %s74
      %p81 = scmp.eq.s32.totalorder %s22, 1
      %p82 = por %p80, %p81
      %p83 = scmp.ne.s32.totalorder %s74, %s75
      %p84 = scmp.eq.s32.totalorder %s22, 0
      %p85 = por %p83, %p84
      %p86 = scmp.ne.s32.totalorder %s74, %s75
      %p87 = scmp.eq.s32.totalorder %s23, 1
      %p88 = por %p86, %p87
      %p90 = scmp.ne.s32.totalorder %s75, %s89
      %p91 = scmp.eq.s32.totalorder %s23, 0
      %p92 = por %p90, %p91
      %s94 = sadd.s32 %s93, 1
      %p97 = scmp.eq.s32.totalorder %s17, 1
      %p98 = scmp.ne.s32.totalorder %s93, %s95
      %p99 = scmp.eq.s32.totalorder %s17, 0
      %p100 = por %p98, %p99
      %p101 = scmp.ne.s32.totalorder %s93, %s95
      %p102 = scmp.eq.s32.totalorder %s22, 1
      %p103 = por %p101, %p102
      %p104 = scmp.ne.s32.totalorder %s95, %s96
      %p105 = scmp.eq.s32.totalorder %s22, 0
      %p106 = por %p104, %p105
      %p107 = scmp.ne.s32.totalorder %s95, %s96
      %p108 = scmp.eq.s32.totalorder %s23, 1
      %p109 = por %p107, %p108
      %p111 = scmp.ne.s32.totalorder %s96, %s110
      %p112 = scmp.eq.s32.totalorder %s23, 0
      %p113 = por %p111, %p112
      %s115 = sadd.s32 %s114, 1
      %p118 = scmp.eq.s32.totalorder %s17, 1
      %p119 = scmp.ne.s32.totalorder %s114, %s116
      %p120 = scmp.eq.s32.totalorder %s17, 0
      %p121 = por %p119, %p120
      %p122 = scmp.ne.s32.totalorder %s114, %s116
      %p123 = scmp.eq.s32.totalorder %s22, 1
      %p124 = por %p122, %p123
      %p125 = scmp.ne.s32.totalorder %s116, %s117
      %p126 = scmp.eq.s32.totalorder %s22, 0
      %p127 = por %p125, %p126
      %p128 = scmp.ne.s32.totalorder %s116, %s117
      %p129 = scmp.eq.s32.totalorder %s23, 1
      %p130 = por %p128, %p129
      %p132 = scmp.ne.s32.totalorder %s117, %s131
      %p133 = scmp.eq.s32.totalorder %s23, 0
      %p134 = por %p132, %p133
      %s136 = sadd.s32 %s135, 1
      %p139 = scmp.eq.s32.totalorder %s17, 1
      %p140 = scmp.ne.s32.totalorder %s135, %s137
      %p141 = scmp.eq.s32.totalorder %s17, 0
      %p142 = por %p140, %p141
      %p143 = scmp.ne.s32.totalorder %s135, %s137
      %p144 = scmp.eq.s32.totalorder %s22, 1
      %p145 = por %p143, %p144
      %p146 = scmp.ne.s32.totalorder %s137, %s138
      %p147 = scmp.eq.s32.totalorder %s22, 0
      %p148 = por %p146, %p147
      %p149 = scmp.ne.s32.totalorder %s137, %s138
      %p150 = scmp.eq.s32.totalorder %s23, 1
      %p151 = por %p149, %p150
      %p153 = scmp.ne.s32.totalorder %s138, %s152
      %p154 = scmp.eq.s32.totalorder %s23, 0
      %p155 = por %p153, %p154
      %s157 = sadd.s32 %s156, 1
      %p160 = scmp.eq.s32.totalorder %s17, 1
      %p161 = scmp.ne.s32.totalorder %s156, %s158
      %p162 = scmp.eq.s32.totalorder %s17, 0
      %p163 = por %p161, %p162
      %p164 = scmp.ne.s32.totalorder %s156, %s158
      %p165 = scmp.eq.s32.totalorder %s22, 1
      %p166 = por %p164, %p165
      %p167 = scmp.ne.s32.totalorder %s158, %s159
      %p168 = scmp.eq.s32.totalorder %s22, 0
      %p169 = por %p167, %p168
      %p170 = scmp.ne.s32.totalorder %s158, %s159
      %p171 = scmp.eq.s32.totalorder %s23, 1
      %p172 = por %p170, %p171
      %p174 = scmp.ne.s32.totalorder %s159, %s173
      %p175 = scmp.eq.s32.totalorder %s23, 0
      %p176 = por %p174, %p175
      %p177 = scmp.le.s32.totalorder 1, %s17
      %p178 = scmp.lt.s32.totalorder %s17, 3
      %p179 = pnand %p177, %p178
      %p180 = pneg %p179
      // Predicated region
      $region9: #{tpu_custom_call.1} parent=5 // pred_check
        _
      $region10: #{tpu_custom_call.1} parent=5 // pred_check_branch
        %182 = sbr.rel (%p179) target = $region12
      $region11: #{tpu_custom_call.1} parent=5 // pred_region
        %s183 = ssub.s32 %s17, 1
        // Predicated region
        $region13: #{tpu_custom_call.1} parent=11 // pred_check
          %p184 = pneg %p64
        $region14: #{tpu_custom_call.1} parent=11 // pred_check_branch
          %186 = sbr.rel (%p184) target = $region16
        $region15: #{tpu_custom_call.1} parent=11 // pred_region
          %188 = vsyncadd [#allocation10], 0
          %s189 = sshll.u32 %s1, 4
          %s190 = int_to_ptr.hbm [resolvable:$true] %s189
          %s191 = sshll.u32 [#allocation9], 4
          %s192 = int_to_ptr.vmem [resolvable:$true] %s191
          %197 = dma.hbm_to_vmem [thread:$0]  %s190, 18432, %s192, [#allocation10], 128, 128, 8
        $region16: #{tpu_custom_call.1} parent=11 // pred_fallthru
          _
        // Predicated region
        $region17: #{tpu_custom_call.1} parent=11 // pred_check
          %p198 = pneg %p85
        $region18: #{tpu_custom_call.1} parent=11 // pred_check_branch
          %200 = sbr.rel (%p198) target = $region20
        $region19: #{tpu_custom_call.1} parent=11 // pred_region
          _
        $region20: #{tpu_custom_call.1} parent=11 // pred_fallthru
          _
        // Predicated region
        $region21: #{tpu_custom_call.1} parent=11 // pred_check
          %p201 = pneg %p106
        $region22: #{tpu_custom_call.1} parent=11 // pred_check_branch
          %203 = sbr.rel (%p201) target = $region24
        $region23: #{tpu_custom_call.1} parent=11 // pred_region
          _
        $region24: #{tpu_custom_call.1} parent=11 // pred_fallthru
          _
        // Predicated region
        $region25: #{tpu_custom_call.1} parent=11 // pred_check
          %p204 = pneg %p127
        $region26: #{tpu_custom_call.1} parent=11 // pred_check_branch
          %206 = sbr.rel (%p204) target = $region28
        $region27: #{tpu_custom_call.1} parent=11 // pred_region
          %208 = vsyncadd [#allocation10], 0
          %s209 = sshll.u32 %s4, 4
          %s210 = int_to_ptr.hbm [resolvable:$true] %s209
          %s211 = sshll.u32 [#allocation11], 4
          %s212 = int_to_ptr.vmem [resolvable:$true] %s211
          %217 = dma.hbm_to_vmem [thread:$0]  %s210, 2048, %s212, [#allocation10], 128, 128, 8
        $region28: #{tpu_custom_call.1} parent=11 // pred_fallthru
          _
        // Predicated region
        $region29: #{tpu_custom_call.1} parent=11 // pred_check
          %p218 = pneg %p148
        $region30: #{tpu_custom_call.1} parent=11 // pred_check_branch
          %220 = sbr.rel (%p218) target = $region32
        $region31: #{tpu_custom_call.1} parent=11 // pred_region
          _
        $region32: #{tpu_custom_call.1} parent=11 // pred_fallthru
          _
      $region12: #{tpu_custom_call.1} parent=5 // pred_fallthru
        _
      %p221 = scmp.lt.s32.totalorder %s17, 2
      // Predicated region
      $region33: #{tpu_custom_call.1} parent=5 // pred_check
        %p222 = pneg %p221
      $region34: #{tpu_custom_call.1} parent=5 // pred_check_branch
        %224 = sbr.rel (%p222) target = $region36
      $region35: #{tpu_custom_call.1} parent=5 // pred_region
        // Predicated region
        $region37: #{tpu_custom_call.1} parent=35 // pred_check
          %p225 = pneg %p37
        $region38: #{tpu_custom_call.1} parent=35 // pred_check_branch
          %227 = sbr.rel (%p225) target = $region40
        $region39: #{tpu_custom_call.1} parent=35 // pred_region
          %s228 = sand.u32 %s27, 1
          %s229 = scalar_lea.sflag [#allocation7], %s228
          %s230 = sand.u32 %s27, 1
          %s231 = smul.addr %s230, 64
          %s232 = scalar_lea.vmem [#allocation6], %s231
          %234 = vsyncadd %s229, 0
          %s235 = smul.addr %s17, 8
          %s236 = smul.addr %s235, 8
          %s237 = scalar_lea.hbm %s0, %s236
          %s238 = sshll.u32 %s237, 4
          %s239 = int_to_ptr.hbm [resolvable:$true] %s238
          %s240 = sshll.u32 %s232, 4
          %s241 = int_to_ptr.vmem [resolvable:$true] %s240
          %246 = dma.hbm_to_vmem [thread:$0]  %s239, 1024, %s241, %s229, 128, 128, 8
        $region40: #{tpu_custom_call.1} parent=35 // pred_fallthru
          _
      $region36: #{tpu_custom_call.1} parent=5 // pred_fallthru
        _
      %p247 = scmp.le.s32.totalorder 1, %s17
      %p248 = scmp.lt.s32.totalorder %s17, 3
      %p249 = pnand %p247, %p248
      %p250 = pneg %p249
      // Predicated region
      $region41: #{tpu_custom_call.1} parent=5 // pred_check
        _
      $region42: #{tpu_custom_call.1} parent=5 // pred_check_branch
        %252 = sbr.rel (%p249) target = $region44
      $region43: #{tpu_custom_call.1} parent=5 // pred_region
        %s253 = ssub.s32 %s17, 1
        %s254 = sand.u32 %s30, 1
        %s255 = scalar_lea.sflag [#allocation7], %s254
        %s256 = sand.u32 %s30, 1
        %s257 = smul.addr %s256, 64
        %s258 = scalar_lea.vmem [#allocation6], %s257
        // Predicated region
        $region45: #{tpu_custom_call.1} parent=43 // pred_check
          %p259 = pneg %p43
        $region46: #{tpu_custom_call.1} parent=43 // pred_check_branch
          %261 = sbr.rel (%p259) target = $region48
        $region47: #{tpu_custom_call.1} parent=43 // pred_region
          %263 = dma.done %s255, 1024
        $region48: #{tpu_custom_call.1} parent=43 // pred_fallthru
          _
        // Predicated region
        $region49: #{tpu_custom_call.1} parent=43 // pred_check
          %p264 = pneg %p64
        $region50: #{tpu_custom_call.1} parent=43 // pred_check_branch
          %266 = sbr.rel (%p264) target = $region52
        $region51: #{tpu_custom_call.1} parent=43 // pred_region
          %268 = dma.done [#allocation10], 18432
        $region52: #{tpu_custom_call.1} parent=43 // pred_fallthru
          _
        // Predicated region
        $region53: #{tpu_custom_call.1} parent=43 // pred_check
          %p269 = pneg %p127
        $region54: #{tpu_custom_call.1} parent=43 // pred_check_branch
          %271 = sbr.rel (%p269) target = $region56
        $region55: #{tpu_custom_call.1} parent=43 // pred_region
          %273 = dma.done [#allocation10], 2048
        $region56: #{tpu_custom_call.1} parent=43 // pred_fallthru
          _
        %s274 = sand.u32 %s30, 1
        %s275 = scalar_lea.sflag [#allocation7], %s274
        %s276 = sand.u32 %s30, 1
        %s277 = smul.addr %s276, 64
        %s278 = scalar_lea.vmem [#allocation6], %s277
        %p279 = pneg %p43
        %p280 = pneg %p40
        %p281 = pneg %p64
        %p282 = pneg %p61
        %p283 = pneg %p85
        %p284 = pneg %p82
        %p285 = pneg %p106
        %p286 = pneg %p103
        %p287 = pneg %p127
        %p288 = pneg %p124
        %p289 = pneg %p148
        %p290 = pneg %p145
        %p291 = pneg %p169
        %p292 = pneg %p166
        %p293 = scmp.eq.s32.totalorder %s22, 0
        // Predicated region
        $region57: #{tpu_custom_call.1} parent=43 // pred_check
          %p294 = pneg %p293
        $region58: #{tpu_custom_call.1} parent=43 // pred_check_branch
          %296 = sbr.rel (%p294) target = $region60
        $region59: #{tpu_custom_call.1} parent=43 // pred_region
          %297 = vst [vmem:[#allocation2] sm:$0xff] 0.0
          %298 = vst [vmem:[#allocation2 + $0x8] sm:$0xff] 0.0
          %299 = vst [vmem:[#allocation2 + $0x10] sm:$0xff] 0.0
          %300 = vst [vmem:[#allocation2 + $0x18] sm:$0xff] 0.0
          %301 = vst [vmem:[#allocation2 + $0x20] sm:$0xff] 0.0
          %302 = vst [vmem:[#allocation2 + $0x28] sm:$0xff] 0.0
          %303 = vst [vmem:[#allocation2 + $0x30] sm:$0xff] 0.0
          %304 = vst [vmem:[#allocation2 + $0x38] sm:$0xff] 0.0
          %305 = vst [vmem:[#allocation2 + $0x40] sm:$0xff] 0.0
          %306 = vst [vmem:[#allocation2 + $0x48] sm:$0xff] 0.0
          %307 = vst [vmem:[#allocation2 + $0x50] sm:$0xff] 0.0
          %308 = vst [vmem:[#allocation2 + $0x58] sm:$0xff] 0.0
          %309 = vst [vmem:[#allocation2 + $0x60] sm:$0xff] 0.0
          %310 = vst [vmem:[#allocation2 + $0x68] sm:$0xff] 0.0
          %311 = vst [vmem:[#allocation2 + $0x70] sm:$0xff] 0.0
          %312 = vst [vmem:[#allocation2 + $0x78] sm:$0xff] 0.0
          %313 = vst [vmem:[#allocation2 + $0x80] sm:$0xff] 0.0
          %314 = vst [vmem:[#allocation2 + $0x88] sm:$0xff] 0.0
          %315 = vst [vmem:[#allocation2 + $0x90] sm:$0xff] 0.0
          %316 = vst [vmem:[#allocation2 + $0x98] sm:$0xff] 0.0
          %317 = vst [vmem:[#allocation2 + $0xa0] sm:$0xff] 0.0
          %318 = vst [vmem:[#allocation2 + $0xa8] sm:$0xff] 0.0
          %319 = vst [vmem:[#allocation2 + $0xb0] sm:$0xff] 0.0
          %320 = vst [vmem:[#allocation2 + $0xb8] sm:$0xff] 0.0
          %321 = vst [vmem:[#allocation2 + $0xc0] sm:$0xff] 0.0
          %322 = vst [vmem:[#allocation2 + $0xc8] sm:$0xff] 0.0
          %323 = vst [vmem:[#allocation2 + $0xd0] sm:$0xff] 0.0
          %324 = vst [vmem:[#allocation2 + $0xd8] sm:$0xff] 0.0
          %325 = vst [vmem:[#allocation2 + $0xe0] sm:$0xff] 0.0
          %326 = vst [vmem:[#allocation2 + $0xe8] sm:$0xff] 0.0
          %327 = vst [vmem:[#allocation4] sm:$0x1] 0.0
          %328 = vst [vmem:[#allocation5] sm:$0x1] 0.0
        $region60: #{tpu_custom_call.1} parent=43 // pred_fallthru
          _
        %v329 = vld [vmem:[%s258] sm:$0xff]
        %v330 = vld [vmem:[%s258 + $0x8] sm:$0xff]
        %v331 = vld [vmem:[%s258 + $0x10] sm:$0xff]
        %v332 = vld [vmem:[%s258 + $0x18] sm:$0xff]
        %v333 = vld [vmem:[%s258 + $0x20] sm:$0xff]
        %v334 = vld [vmem:[%s258 + $0x28] sm:$0xff]
        %v335 = vld [vmem:[%s258 + $0x30] sm:$0xff]
        %v336 = vld [vmem:[%s258 + $0x38] sm:$0xff]
        %s337 = scalar_lea.vmem [#allocation2], 24
        %338 = vst [vmem:[%s337 + $0x8] sm:$0xff] %v329
        %339 = vst [vmem:[%s337 + $0x20] sm:$0xff] %v330
        %340 = vst [vmem:[%s337 + $0x38] sm:$0xff] %v331
        %341 = vst [vmem:[%s337 + $0x50] sm:$0xff] %v332
        %342 = vst [vmem:[%s337 + $0x68] sm:$0xff] %v333
        %343 = vst [vmem:[%s337 + $0x80] sm:$0xff] %v334
        %344 = vst [vmem:[%s337 + $0x98] sm:$0xff] %v335
        %345 = vst [vmem:[%s337 + $0xb0] sm:$0xff] %v336
        %v346 = vld [vmem:[#allocation2 + $0x7] sm:$0xff]
        %v347 = vld [vmem:[#allocation2 + $0x1f] sm:$0xff]
        %v348 = vld [vmem:[#allocation2 + $0x37] sm:$0xff]
        %v349 = vld [vmem:[#allocation2 + $0x4f] sm:$0xff]
        %v350 = vld [vmem:[#allocation2 + $0x67] sm:$0xff]
        %v351 = vld [vmem:[#allocation2 + $0x7f] sm:$0xff]
        %v352 = vld [vmem:[#allocation2 + $0x97] sm:$0xff]
        %v353 = vld [vmem:[#allocation2 + $0xaf] sm:$0xff]
        %v354 = vld [vmem:[#allocation2 + $0xc7] sm:$0xff]
        %v355 = vld [vmem:[#allocation2 + $0xdf] sm:$0xff]
        %v356 = vld [vmem:[#allocation2 + $0x8] sm:$0xff]
        %v357 = vld [vmem:[#allocation2 + $0x20] sm:$0xff]
        %v358 = vld [vmem:[#allocation2 + $0x38] sm:$0xff]
        %v359 = vld [vmem:[#allocation2 + $0x50] sm:$0xff]
        %v360 = vld [vmem:[#allocation2 + $0x68] sm:$0xff]
        %v361 = vld [vmem:[#allocation2 + $0x80] sm:$0xff]
        %v362 = vld [vmem:[#allocation2 + $0x98] sm:$0xff]
        %v363 = vld [vmem:[#allocation2 + $0xb0] sm:$0xff]
        %v364 = vld [vmem:[#allocation2 + $0xc8] sm:$0xff]
        %v365 = vld [vmem:[#allocation2 + $0xe0] sm:$0xff]
        %v366 = vld [vmem:[#allocation2 + $0x9] sm:$0xff]
        %v367 = vld [vmem:[#allocation2 + $0x21] sm:$0xff]
        %v368 = vld [vmem:[#allocation2 + $0x39] sm:$0xff]
        %v369 = vld [vmem:[#allocation2 + $0x51] sm:$0xff]
        %v370 = vld [vmem:[#allocation2 + $0x69] sm:$0xff]
        %v371 = vld [vmem:[#allocation2 + $0x81] sm:$0xff]
        %v372 = vld [vmem:[#allocation2 + $0x99] sm:$0xff]
        %v373 = vld [vmem:[#allocation2 + $0xb1] sm:$0xff]
        %v374 = vld [vmem:[#allocation2 + $0xc9] sm:$0xff]
        %v375 = vld [vmem:[#allocation2 + $0xe1] sm:$0xff]
        %v376 = vld [vmem:[#allocation9] sm:$0xff]
        %v377 = vld [vmem:[#allocation9 + $0x8] sm:$0xff]
        %v378 = vld [vmem:[#allocation9 + $0x10] sm:$0xff]
        %v379 = vld [vmem:[#allocation9 + $0x18] sm:$0xff]
        %v380 = vld [vmem:[#allocation9 + $0x20] sm:$0xff]
        %v381 = vld [vmem:[#allocation9 + $0x28] sm:$0xff]
        %v382 = vld [vmem:[#allocation9 + $0x30] sm:$0xff]
        %v383 = vld [vmem:[#allocation9 + $0x38] sm:$0xff]
        %v384 = vld [vmem:[#allocation9 + $0x40] sm:$0xff]
        %v385 = vld [vmem:[#allocation9 + $0x48] sm:$0xff]
        %v386 = vld [vmem:[#allocation9 + $0x50] sm:$0xff]
        %v387 = vld [vmem:[#allocation9 + $0x58] sm:$0xff]
        %v388 = vld [vmem:[#allocation9 + $0x60] sm:$0xff]
        %v389 = vld [vmem:[#allocation9 + $0x68] sm:$0xff]
        %v390 = vld [vmem:[#allocation9 + $0x70] sm:$0xff]
        %v391 = vld [vmem:[#allocation9 + $0x78] sm:$0xff]
        %v392 = vld [vmem:[#allocation9 + $0x80] sm:$0xff]
        %v393 = vld [vmem:[#allocation9 + $0x88] sm:$0xff]
        %v394 = vld [vmem:[#allocation9 + $0x90] sm:$0xff]
        %v395 = vld [vmem:[#allocation9 + $0x98] sm:$0xff]
        %v396 = vld [vmem:[#allocation9 + $0xa0] sm:$0xff]
        %v397 = vld [vmem:[#allocation9 + $0xa8] sm:$0xff]
        %v398 = vld [vmem:[#allocation9 + $0xb0] sm:$0xff]
        %v399 = vld [vmem:[#allocation9 + $0xb8] sm:$0xff]
        %v400 = vld [vmem:[#allocation9 + $0xc0] sm:$0xff]
        %v401 = vld [vmem:[#allocation9 + $0xc8] sm:$0xff]
        %v402 = vld [vmem:[#allocation9 + $0xd0] sm:$0xff]
        %v403 = vld [vmem:[#allocation9 + $0xd8] sm:$0xff]
        %v404 = vld [vmem:[#allocation9 + $0xe0] sm:$0xff]
        %v405 = vld [vmem:[#allocation9 + $0xe8] sm:$0xff]
        %v406 = vld [vmem:[#allocation9 + $0xf0] sm:$0xff]
        %v407 = vld [vmem:[#allocation9 + $0xf8] sm:$0xff]
        %v408 = vld [vmem:[#allocation9 + $0x100] sm:$0xff]
        %v409 = vld [vmem:[#allocation9 + $0x108] sm:$0xff]
        %v410 = vld [vmem:[#allocation9 + $0x110] sm:$0xff]
        %v411 = vld [vmem:[#allocation9 + $0x118] sm:$0xff]
        %v412 = vld [vmem:[#allocation9 + $0x120] sm:$0xff]
        %v413 = vld [vmem:[#allocation9 + $0x128] sm:$0xff]
        %v414 = vld [vmem:[#allocation9 + $0x130] sm:$0xff]
        %v415 = vld [vmem:[#allocation9 + $0x138] sm:$0xff]
        %v416 = vld [vmem:[#allocation9 + $0x140] sm:$0xff]
        %v417 = vld [vmem:[#allocation9 + $0x148] sm:$0xff]
        %v418 = vld [vmem:[#allocation9 + $0x150] sm:$0xff]
        %v419 = vld [vmem:[#allocation9 + $0x158] sm:$0xff]
        %v420 = vld [vmem:[#allocation9 + $0x160] sm:$0xff]
        %v421 = vld [vmem:[#allocation9 + $0x168] sm:$0xff]
        %v422 = vld [vmem:[#allocation9 + $0x170] sm:$0xff]
        %v423 = vld [vmem:[#allocation9 + $0x178] sm:$0xff]
        %v424 = vld [vmem:[#allocation9 + $0x180] sm:$0xff]
        %v425 = vld [vmem:[#allocation9 + $0x188] sm:$0xff]
        %v426 = vld [vmem:[#allocation9 + $0x190] sm:$0xff]
        %v427 = vld [vmem:[#allocation9 + $0x198] sm:$0xff]
        %v428 = vld [vmem:[#allocation9 + $0x1a0] sm:$0xff]
        %v429 = vld [vmem:[#allocation9 + $0x1a8] sm:$0xff]
        %v430 = vld [vmem:[#allocation9 + $0x1b0] sm:$0xff]
        %v431 = vld [vmem:[#allocation9 + $0x1b8] sm:$0xff]
        %v432 = vld [vmem:[#allocation9 + $0x1c0] sm:$0xff]
        %v433 = vld [vmem:[#allocation9 + $0x1c8] sm:$0xff]
        %v434 = vld [vmem:[#allocation9 + $0x1d0] sm:$0xff]
        %v435 = vld [vmem:[#allocation9 + $0x1d8] sm:$0xff]
        %v436 = vld [vmem:[#allocation9 + $0x1e0] sm:$0xff]
        %v437 = vld [vmem:[#allocation9 + $0x1e8] sm:$0xff]
        %v438 = vld [vmem:[#allocation9 + $0x1f0] sm:$0xff]
        %v439 = vld [vmem:[#allocation9 + $0x1f8] sm:$0xff]
        %v440 = vld [vmem:[#allocation9 + $0x200] sm:$0xff]
        %v441 = vld [vmem:[#allocation9 + $0x208] sm:$0xff]
        %v442 = vld [vmem:[#allocation9 + $0x210] sm:$0xff]
        %v443 = vld [vmem:[#allocation9 + $0x218] sm:$0xff]
        %v444 = vld [vmem:[#allocation9 + $0x220] sm:$0xff]
        %v445 = vld [vmem:[#allocation9 + $0x228] sm:$0xff]
        %v446 = vld [vmem:[#allocation9 + $0x230] sm:$0xff]
        %v447 = vld [vmem:[#allocation9 + $0x238] sm:$0xff]
        %v448 = vld [vmem:[#allocation9 + $0x240] sm:$0xff]
        %v449 = vld [vmem:[#allocation9 + $0x248] sm:$0xff]
        %v450 = vld [vmem:[#allocation9 + $0x250] sm:$0xff]
        %v451 = vld [vmem:[#allocation9 + $0x258] sm:$0xff]
        %v452 = vld [vmem:[#allocation9 + $0x260] sm:$0xff]
        %v453 = vld [vmem:[#allocation9 + $0x268] sm:$0xff]
        %v454 = vld [vmem:[#allocation9 + $0x270] sm:$0xff]
        %v455 = vld [vmem:[#allocation9 + $0x278] sm:$0xff]
        %v456 = vld [vmem:[#allocation9 + $0x280] sm:$0xff]
        %v457 = vld [vmem:[#allocation9 + $0x288] sm:$0xff]
        %v458 = vld [vmem:[#allocation9 + $0x290] sm:$0xff]
        %v459 = vld [vmem:[#allocation9 + $0x298] sm:$0xff]
        %v460 = vld [vmem:[#allocation9 + $0x2a0] sm:$0xff]
        %v461 = vld [vmem:[#allocation9 + $0x2a8] sm:$0xff]
        %v462 = vld [vmem:[#allocation9 + $0x2b0] sm:$0xff]
        %v463 = vld [vmem:[#allocation9 + $0x2b8] sm:$0xff]
        %v464 = vld [vmem:[#allocation9 + $0x2c0] sm:$0xff]
        %v465 = vld [vmem:[#allocation9 + $0x2c8] sm:$0xff]
        %v466 = vld [vmem:[#allocation9 + $0x2d0] sm:$0xff]
        %v467 = vld [vmem:[#allocation9 + $0x2d8] sm:$0xff]
        %v468 = vld [vmem:[#allocation9 + $0x2e0] sm:$0xff]
        %v469 = vld [vmem:[#allocation9 + $0x2e8] sm:$0xff]
        %v470 = vld [vmem:[#allocation9 + $0x2f0] sm:$0xff]
        %v471 = vld [vmem:[#allocation9 + $0x2f8] sm:$0xff]
        %v472 = vld [vmem:[#allocation9 + $0x300] sm:$0xff]
        %v473 = vld [vmem:[#allocation9 + $0x308] sm:$0xff]
        %v474 = vld [vmem:[#allocation9 + $0x310] sm:$0xff]
        %v475 = vld [vmem:[#allocation9 + $0x318] sm:$0xff]
        %v476 = vld [vmem:[#allocation9 + $0x320] sm:$0xff]
        %v477 = vld [vmem:[#allocation9 + $0x328] sm:$0xff]
        %v478 = vld [vmem:[#allocation9 + $0x330] sm:$0xff]
        %v479 = vld [vmem:[#allocation9 + $0x338] sm:$0xff]
        %v480 = vld [vmem:[#allocation9 + $0x340] sm:$0xff]
        %v481 = vld [vmem:[#allocation9 + $0x348] sm:$0xff]
        %v482 = vld [vmem:[#allocation9 + $0x350] sm:$0xff]
        %v483 = vld [vmem:[#allocation9 + $0x358] sm:$0xff]
        %v484 = vld [vmem:[#allocation9 + $0x360] sm:$0xff]
        %v485 = vld [vmem:[#allocation9 + $0x368] sm:$0xff]
        %v486 = vld [vmem:[#allocation9 + $0x370] sm:$0xff]
        %v487 = vld [vmem:[#allocation9 + $0x378] sm:$0xff]
        %v488 = vld [vmem:[#allocation9 + $0x380] sm:$0xff]
        %v489 = vld [vmem:[#allocation9 + $0x388] sm:$0xff]
        %v490 = vld [vmem:[#allocation9 + $0x390] sm:$0xff]
        %v491 = vld [vmem:[#allocation9 + $0x398] sm:$0xff]
        %v492 = vld [vmem:[#allocation9 + $0x3a0] sm:$0xff]
        %v493 = vld [vmem:[#allocation9 + $0x3a8] sm:$0xff]
        %v494 = vld [vmem:[#allocation9 + $0x3b0] sm:$0xff]
        %v495 = vld [vmem:[#allocation9 + $0x3b8] sm:$0xff]
        %v496 = vld [vmem:[#allocation9 + $0x3c0] sm:$0xff]
        %v497 = vld [vmem:[#allocation9 + $0x3c8] sm:$0xff]
        %v498 = vld [vmem:[#allocation9 + $0x3d0] sm:$0xff]
        %v499 = vld [vmem:[#allocation9 + $0x3d8] sm:$0xff]
        %v500 = vld [vmem:[#allocation9 + $0x3e0] sm:$0xff]
        %v501 = vld [vmem:[#allocation9 + $0x3e8] sm:$0xff]
        %v502 = vld [vmem:[#allocation9 + $0x3f0] sm:$0xff]
        %v503 = vld [vmem:[#allocation9 + $0x3f8] sm:$0xff]
        %v504 = vld [vmem:[#allocation9 + $0x400] sm:$0xff]
        %v505 = vld [vmem:[#allocation9 + $0x408] sm:$0xff]
        %v506 = vld [vmem:[#allocation9 + $0x410] sm:$0xff]
        %v507 = vld [vmem:[#allocation9 + $0x418] sm:$0xff]
        %v508 = vld [vmem:[#allocation9 + $0x420] sm:$0xff]
        %v509 = vld [vmem:[#allocation9 + $0x428] sm:$0xff]
        %v510 = vld [vmem:[#allocation9 + $0x430] sm:$0xff]
        %v511 = vld [vmem:[#allocation9 + $0x438] sm:$0xff]
        %v512 = vld [vmem:[#allocation9 + $0x440] sm:$0xff]
        %v513 = vld [vmem:[#allocation9 + $0x448] sm:$0xff]
        %v514 = vld [vmem:[#allocation9 + $0x450] sm:$0xff]
        %v515 = vld [vmem:[#allocation9 + $0x458] sm:$0xff]
        %v516 = vld [vmem:[#allocation9 + $0x460] sm:$0xff]
        %v517 = vld [vmem:[#allocation9 + $0x468] sm:$0xff]
        %v518 = vld [vmem:[#allocation9 + $0x470] sm:$0xff]
        %v519 = vld [vmem:[#allocation9 + $0x478] sm:$0xff]
        %520 = vmatpush.msra.mxu0 %v391
        %521 = vmatpush.msra.mxu0 %v390
        %522 = vmatpush.msra.mxu0 %v389
        %523 = vmatpush.msra.mxu0 %v388
        %524 = vmatpush.msra.mxu0 %v387
        %525 = vmatpush.msra.mxu0 %v386
        %526 = vmatpush.msra.mxu0 %v385
        %527 = vmatpush.msra.mxu0 %v384
        %528 = vmatpush.msra.mxu0 %v383
        %529 = vmatpush.msra.mxu0 %v382
        %530 = vmatpush.msra.mxu0 %v381
        %531 = vmatpush.msra.mxu0 %v380
        %532 = vmatpush.msra.mxu0 %v379
        %533 = vmatpush.msra.mxu0 %v378
        %534 = vmatpush.msra.mxu0 %v377
        %535 = vmatpush.msra.mxu0 %v376
        %536 = vmatmul.f32.gmra.mxu0 %v346
        %v537 = vpop.f32.mrf.mxu0
        %v538 = vadd.f32 0.0, %v537
        %539 = vmatmul.f32.gmra.mxu0 %v347
        %v540 = vpop.f32.mrf.mxu0
        %v541 = vadd.f32 0.0, %v540
        %542 = vmatmul.f32.gmra.mxu0 %v348
        %v543 = vpop.f32.mrf.mxu0
        %v544 = vadd.f32 0.0, %v543
        %545 = vmatmul.f32.gmra.mxu0 %v349
        %v546 = vpop.f32.mrf.mxu0
        %v547 = vadd.f32 0.0, %v546
        %548 = vmatmul.f32.gmra.mxu0 %v350
        %v549 = vpop.f32.mrf.mxu0
        %v550 = vadd.f32 0.0, %v549
        %551 = vmatmul.f32.gmra.mxu0 %v351
        %v552 = vpop.f32.mrf.mxu0
        %v553 = vadd.f32 0.0, %v552
        %554 = vmatmul.f32.gmra.mxu0 %v352
        %v555 = vpop.f32.mrf.mxu0
        %v556 = vadd.f32 0.0, %v555
        %557 = vmatmul.f32.gmra.mxu0 %v353
        %v558 = vpop.f32.mrf.mxu0
        %v559 = vadd.f32 0.0, %v558
        %560 = vdwg.mxu0
        %561 = vmatpush.msra.mxu0 %v407
        %562 = vmatpush.msra.mxu0 %v406
        %563 = vmatpush.msra.mxu0 %v405
        %564 = vmatpush.msra.mxu0 %v404
        %565 = vmatpush.msra.mxu0 %v403
        %566 = vmatpush.msra.mxu0 %v402
        %567 = vmatpush.msra.mxu0 %v401
        %568 = vmatpush.msra.mxu0 %v400
        %569 = vmatpush.msra.mxu0 %v399
        %570 = vmatpush.msra.mxu0 %v398
        %571 = vmatpush.msra.mxu0 %v397
        %572 = vmatpush.msra.mxu0 %v396
        %573 = vmatpush.msra.mxu0 %v395
        %574 = vmatpush.msra.mxu0 %v394
        %575 = vmatpush.msra.mxu0 %v393
        %576 = vmatpush.msra.mxu0 %v392
        %577 = vmatmul.f32.gmra.mxu0 %v347
        %v578 = vpop.f32.mrf.mxu0
        %v579 = vadd.f32 %v538, %v578
        %580 = vmatmul.f32.gmra.mxu0 %v348
        %v581 = vpop.f32.mrf.mxu0
        %v582 = vadd.f32 %v541, %v581
        %583 = vmatmul.f32.gmra.mxu0 %v349
        %v584 = vpop.f32.mrf.mxu0
        %v585 = vadd.f32 %v544, %v584
        %586 = vmatmul.f32.gmra.mxu0 %v350
        %v587 = vpop.f32.mrf.mxu0
        %v588 = vadd.f32 %v547, %v587
        %589 = vmatmul.f32.gmra.mxu0 %v351
        %v590 = vpop.f32.mrf.mxu0
        %v591 = vadd.f32 %v550, %v590
        %592 = vmatmul.f32.gmra.mxu0 %v352
        %v593 = vpop.f32.mrf.mxu0
        %v594 = vadd.f32 %v553, %v593
        %595 = vmatmul.f32.gmra.mxu0 %v353
        %v596 = vpop.f32.mrf.mxu0
        %v597 = vadd.f32 %v556, %v596
        %598 = vmatmul.f32.gmra.mxu0 %v354
        %v599 = vpop.f32.mrf.mxu0
        %v600 = vadd.f32 %v559, %v599
        %601 = vdwg.mxu0
        %602 = vmatpush.msra.mxu0 %v423
        %603 = vmatpush.msra.mxu0 %v422
        %604 = vmatpush.msra.mxu0 %v421
        %605 = vmatpush.msra.mxu0 %v420
        %606 = vmatpush.msra.mxu0 %v419
        %607 = vmatpush.msra.mxu0 %v418
        %608 = vmatpush.msra.mxu0 %v417
        %609 = vmatpush.msra.mxu0 %v416
        %610 = vmatpush.msra.mxu0 %v415
        %611 = vmatpush.msra.mxu0 %v414
        %612 = vmatpush.msra.mxu0 %v413
        %613 = vmatpush.msra.mxu0 %v412
        %614 = vmatpush.msra.mxu0 %v411
        %615 = vmatpush.msra.mxu0 %v410
        %616 = vmatpush.msra.mxu0 %v409
        %617 = vmatpush.msra.mxu0 %v408
        %618 = vmatmul.f32.gmra.mxu0 %v348
        %v619 = vpop.f32.mrf.mxu0
        %v620 = vadd.f32 %v579, %v619
        %621 = vmatmul.f32.gmra.mxu0 %v349
        %v622 = vpop.f32.mrf.mxu0
        %v623 = vadd.f32 %v582, %v622
        %624 = vmatmul.f32.gmra.mxu0 %v350
        %v625 = vpop.f32.mrf.mxu0
        %v626 = vadd.f32 %v585, %v625
        %627 = vmatmul.f32.gmra.mxu0 %v351
        %v628 = vpop.f32.mrf.mxu0
        %v629 = vadd.f32 %v588, %v628
        %630 = vmatmul.f32.gmra.mxu0 %v352
        %v631 = vpop.f32.mrf.mxu0
        %v632 = vadd.f32 %v591, %v631
        %633 = vmatmul.f32.gmra.mxu0 %v353
        %v634 = vpop.f32.mrf.mxu0
        %v635 = vadd.f32 %v594, %v634
        %636 = vmatmul.f32.gmra.mxu0 %v354
        %v637 = vpop.f32.mrf.mxu0
        %v638 = vadd.f32 %v597, %v637
        %639 = vmatmul.f32.gmra.mxu0 %v355
        %v640 = vpop.f32.mrf.mxu0
        %v641 = vadd.f32 %v600, %v640
        %642 = vdwg.mxu0
        %643 = vmatpush.msra.mxu0 %v439
        %644 = vmatpush.msra.mxu0 %v438
        %645 = vmatpush.msra.mxu0 %v437
        %646 = vmatpush.msra.mxu0 %v436
        %647 = vmatpush.msra.mxu0 %v435
        %648 = vmatpush.msra.mxu0 %v434
        %649 = vmatpush.msra.mxu0 %v433
        %650 = vmatpush.msra.mxu0 %v432
        %651 = vmatpush.msra.mxu0 %v431
        %652 = vmatpush.msra.mxu0 %v430
        %653 = vmatpush.msra.mxu0 %v429
        %654 = vmatpush.msra.mxu0 %v428
        %655 = vmatpush.msra.mxu0 %v427
        %656 = vmatpush.msra.mxu0 %v426
        %657 = vmatpush.msra.mxu0 %v425
        %658 = vmatpush.msra.mxu0 %v424
        %659 = vmatmul.f32.gmra.mxu0 %v356
        %v660 = vpop.f32.mrf.mxu0
        %v661 = vadd.f32 %v620, %v660
        %662 = vmatmul.f32.gmra.mxu0 %v357
        %v663 = vpop.f32.mrf.mxu0
        %v664 = vadd.f32 %v623, %v663
        %665 = vmatmul.f32.gmra.mxu0 %v358
        %v666 = vpop.f32.mrf.mxu0
        %v667 = vadd.f32 %v626, %v666
        %668 = vmatmul.f32.gmra.mxu0 %v359
        %v669 = vpop.f32.mrf.mxu0
        %v670 = vadd.f32 %v629, %v669
        %671 = vmatmul.f32.gmra.mxu0 %v360
        %v672 = vpop.f32.mrf.mxu0
        %v673 = vadd.f32 %v632, %v672
        %674 = vmatmul.f32.gmra.mxu0 %v361
        %v675 = vpop.f32.mrf.mxu0
        %v676 = vadd.f32 %v635, %v675
        %677 = vmatmul.f32.gmra.mxu0 %v362
        %v678 = vpop.f32.mrf.mxu0
        %v679 = vadd.f32 %v638, %v678
        %680 = vmatmul.f32.gmra.mxu0 %v363
        %v681 = vpop.f32.mrf.mxu0
        %v682 = vadd.f32 %v641, %v681
        %683 = vdwg.mxu0
        %684 = vmatpush.msra.mxu0 %v455
        %685 = vmatpush.msra.mxu0 %v454
        %686 = vmatpush.msra.mxu0 %v453
        %687 = vmatpush.msra.mxu0 %v452
        %688 = vmatpush.msra.mxu0 %v451
        %689 = vmatpush.msra.mxu0 %v450
        %690 = vmatpush.msra.mxu0 %v449
        %691 = vmatpush.msra.mxu0 %v448
        %692 = vmatpush.msra.mxu0 %v447
        %693 = vmatpush.msra.mxu0 %v446
        %694 = vmatpush.msra.mxu0 %v445
        %695 = vmatpush.msra.mxu0 %v444
        %696 = vmatpush.msra.mxu0 %v443
        %697 = vmatpush.msra.mxu0 %v442
        %698 = vmatpush.msra.mxu0 %v441
        %699 = vmatpush.msra.mxu0 %v440
        %700 = vmatmul.f32.gmra.mxu0 %v357
        %v701 = vpop.f32.mrf.mxu0
        %v702 = vadd.f32 %v661, %v701
        %703 = vmatmul.f32.gmra.mxu0 %v358
        %v704 = vpop.f32.mrf.mxu0
        %v705 = vadd.f32 %v664, %v704
        %706 = vmatmul.f32.gmra.mxu0 %v359
        %v707 = vpop.f32.mrf.mxu0
        %v708 = vadd.f32 %v667, %v707
        %709 = vmatmul.f32.gmra.mxu0 %v360
        %v710 = vpop.f32.mrf.mxu0
        %v711 = vadd.f32 %v670, %v710
        %712 = vmatmul.f32.gmra.mxu0 %v361
        %v713 = vpop.f32.mrf.mxu0
        %v714 = vadd.f32 %v673, %v713
        %715 = vmatmul.f32.gmra.mxu0 %v362
        %v716 = vpop.f32.mrf.mxu0
        %v717 = vadd.f32 %v676, %v716
        %718 = vmatmul.f32.gmra.mxu0 %v363
        %v719 = vpop.f32.mrf.mxu0
        %v720 = vadd.f32 %v679, %v719
        %721 = vmatmul.f32.gmra.mxu0 %v364
        %v722 = vpop.f32.mrf.mxu0
        %v723 = vadd.f32 %v682, %v722
        %724 = vdwg.mxu0
        %725 = vmatpush.msra.mxu0 %v471
        %726 = vmatpush.msra.mxu0 %v470
        %727 = vmatpush.msra.mxu0 %v469
        %728 = vmatpush.msra.mxu0 %v468
        %729 = vmatpush.msra.mxu0 %v467
        %730 = vmatpush.msra.mxu0 %v466
        %731 = vmatpush.msra.mxu0 %v465
        %732 = vmatpush.msra.mxu0 %v464
        %733 = vmatpush.msra.mxu0 %v463
        %734 = vmatpush.msra.mxu0 %v462
        %735 = vmatpush.msra.mxu0 %v461
        %736 = vmatpush.msra.mxu0 %v460
        %737 = vmatpush.msra.mxu0 %v459
        %738 = vmatpush.msra.mxu0 %v458
        %739 = vmatpush.msra.mxu0 %v457
        %740 = vmatpush.msra.mxu0 %v456
        %741 = vmatmul.f32.gmra.mxu0 %v358
        %v742 = vpop.f32.mrf.mxu0
        %v743 = vadd.f32 %v702, %v742
        %744 = vmatmul.f32.gmra.mxu0 %v359
        %v745 = vpop.f32.mrf.mxu0
        %v746 = vadd.f32 %v705, %v745
        %747 = vmatmul.f32.gmra.mxu0 %v360
        %v748 = vpop.f32.mrf.mxu0
        %v749 = vadd.f32 %v708, %v748
        %750 = vmatmul.f32.gmra.mxu0 %v361
        %v751 = vpop.f32.mrf.mxu0
        %v752 = vadd.f32 %v711, %v751
        %753 = vmatmul.f32.gmra.mxu0 %v362
        %v754 = vpop.f32.mrf.mxu0
        %v755 = vadd.f32 %v714, %v754
        %756 = vmatmul.f32.gmra.mxu0 %v363
        %v757 = vpop.f32.mrf.mxu0
        %v758 = vadd.f32 %v717, %v757
        %759 = vmatmul.f32.gmra.mxu0 %v364
        %v760 = vpop.f32.mrf.mxu0
        %v761 = vadd.f32 %v720, %v760
        %762 = vmatmul.f32.gmra.mxu0 %v365
        %v763 = vpop.f32.mrf.mxu0
        %v764 = vadd.f32 %v723, %v763
        %765 = vdwg.mxu0
        %766 = vmatpush.msra.mxu0 %v487
        %767 = vmatpush.msra.mxu0 %v486
        %768 = vmatpush.msra.mxu0 %v485
        %769 = vmatpush.msra.mxu0 %v484
        %770 = vmatpush.msra.mxu0 %v483
        %771 = vmatpush.msra.mxu0 %v482
        %772 = vmatpush.msra.mxu0 %v481
        %773 = vmatpush.msra.mxu0 %v480
        %774 = vmatpush.msra.mxu0 %v479
        %775 = vmatpush.msra.mxu0 %v478
        %776 = vmatpush.msra.mxu0 %v477
        %777 = vmatpush.msra.mxu0 %v476
        %778 = vmatpush.msra.mxu0 %v475
        %779 = vmatpush.msra.mxu0 %v474
        %780 = vmatpush.msra.mxu0 %v473
        %781 = vmatpush.msra.mxu0 %v472
        %782 = vmatmul.f32.gmra.mxu0 %v366
        %v783 = vpop.f32.mrf.mxu0
        %v784 = vadd.f32 %v743, %v783
        %785 = vmatmul.f32.gmra.mxu0 %v367
        %v786 = vpop.f32.mrf.mxu0
        %v787 = vadd.f32 %v746, %v786
        %788 = vmatmul.f32.gmra.mxu0 %v368
        %v789 = vpop.f32.mrf.mxu0
        %v790 = vadd.f32 %v749, %v789
        %791 = vmatmul.f32.gmra.mxu0 %v369
        %v792 = vpop.f32.mrf.mxu0
        %v793 = vadd.f32 %v752, %v792
        %794 = vmatmul.f32.gmra.mxu0 %v370
        %v795 = vpop.f32.mrf.mxu0
        %v796 = vadd.f32 %v755, %v795
        %797 = vmatmul.f32.gmra.mxu0 %v371
        %v798 = vpop.f32.mrf.mxu0
        %v799 = vadd.f32 %v758, %v798
        %800 = vmatmul.f32.gmra.mxu0 %v372
        %v801 = vpop.f32.mrf.mxu0
        %v802 = vadd.f32 %v761, %v801
        %803 = vmatmul.f32.gmra.mxu0 %v373
        %v804 = vpop.f32.mrf.mxu0
        %v805 = vadd.f32 %v764, %v804
        %806 = vdwg.mxu0
        %807 = vmatpush.msra.mxu0 %v503
        %808 = vmatpush.msra.mxu0 %v502
        %809 = vmatpush.msra.mxu0 %v501
        %810 = vmatpush.msra.mxu0 %v500
        %811 = vmatpush.msra.mxu0 %v499
        %812 = vmatpush.msra.mxu0 %v498
        %813 = vmatpush.msra.mxu0 %v497
        %814 = vmatpush.msra.mxu0 %v496
        %815 = vmatpush.msra.mxu0 %v495
        %816 = vmatpush.msra.mxu0 %v494
        %817 = vmatpush.msra.mxu0 %v493
        %818 = vmatpush.msra.mxu0 %v492
        %819 = vmatpush.msra.mxu0 %v491
        %820 = vmatpush.msra.mxu0 %v490
        %821 = vmatpush.msra.mxu0 %v489
        %822 = vmatpush.msra.mxu0 %v488
        %823 = vmatmul.f32.gmra.mxu0 %v367
        %v824 = vpop.f32.mrf.mxu0
        %v825 = vadd.f32 %v784, %v824
        %826 = vmatmul.f32.gmra.mxu0 %v368
        %v827 = vpop.f32.mrf.mxu0
        %v828 = vadd.f32 %v787, %v827
        %829 = vmatmul.f32.gmra.mxu0 %v369
        %v830 = vpop.f32.mrf.mxu0
        %v831 = vadd.f32 %v790, %v830
        %832 = vmatmul.f32.gmra.mxu0 %v370
        %v833 = vpop.f32.mrf.mxu0
        %v834 = vadd.f32 %v793, %v833
        %835 = vmatmul.f32.gmra.mxu0 %v371
        %v836 = vpop.f32.mrf.mxu0
        %v837 = vadd.f32 %v796, %v836
        %838 = vmatmul.f32.gmra.mxu0 %v372
        %v839 = vpop.f32.mrf.mxu0
        %v840 = vadd.f32 %v799, %v839
        %841 = vmatmul.f32.gmra.mxu0 %v373
        %v842 = vpop.f32.mrf.mxu0
        %v843 = vadd.f32 %v802, %v842
        %844 = vmatmul.f32.gmra.mxu0 %v374
        %v845 = vpop.f32.mrf.mxu0
        %v846 = vadd.f32 %v805, %v845
        %847 = vdwg.mxu0
        %848 = vmatpush.msra.mxu0 %v519
        %849 = vmatpush.msra.mxu0 %v518
        %850 = vmatpush.msra.mxu0 %v517
        %851 = vmatpush.msra.mxu0 %v516
        %852 = vmatpush.msra.mxu0 %v515
        %853 = vmatpush.msra.mxu0 %v514
        %854 = vmatpush.msra.mxu0 %v513
        %855 = vmatpush.msra.mxu0 %v512
        %856 = vmatpush.msra.mxu0 %v511
        %857 = vmatpush.msra.mxu0 %v510
        %858 = vmatpush.msra.mxu0 %v509
        %859 = vmatpush.msra.mxu0 %v508
        %860 = vmatpush.msra.mxu0 %v507
        %861 = vmatpush.msra.mxu0 %v506
        %862 = vmatpush.msra.mxu0 %v505
        %863 = vmatpush.msra.mxu0 %v504
        %864 = vmatmul.f32.gmra.mxu0 %v368
        %v865 = vpop.f32.mrf.mxu0
        %v866 = vadd.f32 %v825, %v865
        %867 = vmatmul.f32.gmra.mxu0 %v369
        %v868 = vpop.f32.mrf.mxu0
        %v869 = vadd.f32 %v828, %v868
        %870 = vmatmul.f32.gmra.mxu0 %v370
        %v871 = vpop.f32.mrf.mxu0
        %v872 = vadd.f32 %v831, %v871
        %873 = vmatmul.f32.gmra.mxu0 %v371
        %v874 = vpop.f32.mrf.mxu0
        %v875 = vadd.f32 %v834, %v874
        %876 = vmatmul.f32.gmra.mxu0 %v372
        %v877 = vpop.f32.mrf.mxu0
        %v878 = vadd.f32 %v837, %v877
        %879 = vmatmul.f32.gmra.mxu0 %v373
        %v880 = vpop.f32.mrf.mxu0
        %v881 = vadd.f32 %v840, %v880
        %882 = vmatmul.f32.gmra.mxu0 %v374
        %v883 = vpop.f32.mrf.mxu0
        %v884 = vadd.f32 %v843, %v883
        %885 = vmatmul.f32.gmra.mxu0 %v375
        %v886 = vpop.f32.mrf.mxu0
        %v887 = vadd.f32 %v846, %v886
        %888 = vdwg.mxu0
        %s889 = smul.u32 %s22, 64
        %s890 = scalar_lea.vmem [#allocation3], %s889
        %891 = vst [vmem:[%s890] sm:$0xff] %v866
        %892 = vst [vmem:[%s890 + $0x8] sm:$0xff] %v869
        %893 = vst [vmem:[%s890 + $0x10] sm:$0xff] %v872
        %894 = vst [vmem:[%s890 + $0x18] sm:$0xff] %v875
        %895 = vst [vmem:[%s890 + $0x20] sm:$0xff] %v878
        %896 = vst [vmem:[%s890 + $0x28] sm:$0xff] %v881
        %897 = vst [vmem:[%s890 + $0x30] sm:$0xff] %v884
        %898 = vst [vmem:[%s890 + $0x38] sm:$0xff] %v887
        %v899 = vld [vmem:[#allocation4] sm:$0x1]
        %v900 = vadd.f32 %v866, %v869
        %v901 = vadd.f32 %v900, %v872
        %v902 = vadd.f32 %v901, %v875
        %v903 = vadd.f32 %v902, %v878
        %v904 = vadd.f32 %v903, %v881
        %v905 = vadd.f32 %v904, %v884
        %v906 = vadd.f32 %v905, %v887
        %v907 = vrot.slane %v906, 4
        %v908 = vadd.f32 %v906, %v907
        %v909 = vrot.slane %v908, 2
        %v910 = vadd.f32 %v908, %v909
        %v911 = vrot.slane %v910, 1
        %v912 = vadd.f32 %v910, %v911
        %v913 = vadd.f32 %v899, %v912
        %914 = vst [vmem:[#allocation4] sm:$0x1] %v913
        %v915 = vld [vmem:[#allocation5] sm:$0x1]
        %v916 = vmul.f32 %v866, %v866
        %v917 = vmul.f32 %v869, %v869
        %v918 = vmul.f32 %v872, %v872
        %v919 = vmul.f32 %v875, %v875
        %v920 = vmul.f32 %v878, %v878
        %v921 = vmul.f32 %v881, %v881
        %v922 = vmul.f32 %v884, %v884
        %v923 = vmul.f32 %v887, %v887
        %v924 = vadd.f32 %v916, %v917
        %v925 = vadd.f32 %v924, %v918
        %v926 = vadd.f32 %v925, %v919
        %v927 = vadd.f32 %v926, %v920
        %v928 = vadd.f32 %v927, %v921
        %v929 = vadd.f32 %v928, %v922
        %v930 = vadd.f32 %v929, %v923
        %v931 = vrot.slane %v930, 4
        %v932 = vadd.f32 %v930, %v931
        %v933 = vrot.slane %v932, 2
        %v934 = vadd.f32 %v932, %v933
        %v935 = vrot.slane %v934, 1
        %v936 = vadd.f32 %v934, %v935
        %v937 = vadd.f32 %v915, %v936
        %938 = vst [vmem:[#allocation5] sm:$0x1] %v937
        %p939 = scmp.eq.s32.totalorder %s22, 1
        // Predicated region
        $region61: #{tpu_custom_call.1} parent=43 // pred_check
          %p940 = pneg %p939
        $region62: #{tpu_custom_call.1} parent=43 // pred_check_branch
          %942 = sbr.rel (%p940) target = $region64
        $region63: #{tpu_custom_call.1} parent=43 // pred_region
          %v943 = vld [vmem:[#allocation4] sm:$0x1]
          %v944 = vmul.f32 %v943, 0.0078125
          %v945 = vld [vmem:[#allocation5] sm:$0x1]
          %v946 = vmul.f32 %v945, 0.0078125
          %v947 = vmul.f32 %v944, %v944
          %v948 = vsub.f32 %v946, %v947
          %v949 = vld [vmem:[%s2] sm:$0x1]
          %v950 = vadd.f32 %v948, 1e-05
          %v951 = vrsqrt.pop %v950
          %v952 = vmul.f32 %v951, %v950
          %v953 = vmul.f32 %v952, %v951
          %v954 = vmul.f32 0.5, %v953
          %v955 = vsub.f32 1.5, %v954
          %v956 = vmul.f32 %v951, %v955
          %vm957 = vweird.f32 %v950
          %vm958 = vweird.f32 %v951
          %vm959 = vmor %vm957, %vm958
          %v960 = vsel %vm959, %v951, %v956
          %v961 = vmul.f32 %v949, %v960
          %v962 = vld [vmem:[%s3] sm:$0x1]
          %v963 = vmul.f32 %v944, %v961
          %v964 = vsub.f32 %v962, %v963
          %v965 = vld [vmem:[#allocation3] sm:$0xff]
          %v966 = vld [vmem:[#allocation3 + $0x8] sm:$0xff]
          %v967 = vld [vmem:[#allocation3 + $0x10] sm:$0xff]
          %v968 = vld [vmem:[#allocation3 + $0x18] sm:$0xff]
          %v969 = vld [vmem:[#allocation3 + $0x20] sm:$0xff]
          %v970 = vld [vmem:[#allocation3 + $0x28] sm:$0xff]
          %v971 = vld [vmem:[#allocation3 + $0x30] sm:$0xff]
          %v972 = vld [vmem:[#allocation3 + $0x38] sm:$0xff]
          %v973 = vld [vmem:[#allocation3 + $0x40] sm:$0xff]
          %v974 = vld [vmem:[#allocation3 + $0x48] sm:$0xff]
          %v975 = vld [vmem:[#allocation3 + $0x50] sm:$0xff]
          %v976 = vld [vmem:[#allocation3 + $0x58] sm:$0xff]
          %v977 = vld [vmem:[#allocation3 + $0x60] sm:$0xff]
          %v978 = vld [vmem:[#allocation3 + $0x68] sm:$0xff]
          %v979 = vld [vmem:[#allocation3 + $0x70] sm:$0xff]
          %v980 = vld [vmem:[#allocation3 + $0x78] sm:$0xff]
          %v982 = vperm.slane %v961, 0
          %v984 = vmul.f32 %v965, %v982
          %v985 = vmul.f32 %v966, %v982
          %v986 = vmul.f32 %v967, %v982
          %v987 = vmul.f32 %v968, %v982
          %v988 = vmul.f32 %v969, %v982
          %v989 = vmul.f32 %v970, %v982
          %v990 = vmul.f32 %v971, %v982
          %v991 = vmul.f32 %v972, %v982
          %v992 = vmul.f32 %v973, %v982
          %v993 = vmul.f32 %v974, %v982
          %v994 = vmul.f32 %v975, %v982
          %v995 = vmul.f32 %v976, %v982
          %v996 = vmul.f32 %v977, %v982
          %v997 = vmul.f32 %v978, %v982
          %v998 = vmul.f32 %v979, %v982
          %v999 = vmul.f32 %v980, %v982
          %v1001 = vperm.slane %v964, 0
          %v1003 = vadd.f32 %v984, %v1001
          %v1004 = vadd.f32 %v985, %v1001
          %v1005 = vadd.f32 %v986, %v1001
          %v1006 = vadd.f32 %v987, %v1001
          %v1007 = vadd.f32 %v988, %v1001
          %v1008 = vadd.f32 %v989, %v1001
          %v1009 = vadd.f32 %v990, %v1001
          %v1010 = vadd.f32 %v991, %v1001
          %v1011 = vadd.f32 %v992, %v1001
          %v1012 = vadd.f32 %v993, %v1001
          %v1013 = vadd.f32 %v994, %v1001
          %v1014 = vadd.f32 %v995, %v1001
          %v1015 = vadd.f32 %v996, %v1001
          %v1016 = vadd.f32 %v997, %v1001
          %v1017 = vadd.f32 %v998, %v1001
          %v1018 = vadd.f32 %v999, %v1001
          %v1019 = vmax.f32 %v1003, 0.0
          %v1020 = vmax.f32 %v1004, 0.0
          %v1021 = vmax.f32 %v1005, 0.0
          %v1022 = vmax.f32 %v1006, 0.0
          %v1023 = vmax.f32 %v1007, 0.0
          %v1024 = vmax.f32 %v1008, 0.0
          %v1025 = vmax.f32 %v1009, 0.0
          %v1026 = vmax.f32 %v1010, 0.0
          %v1027 = vmax.f32 %v1011, 0.0
          %v1028 = vmax.f32 %v1012, 0.0
          %v1029 = vmax.f32 %v1013, 0.0
          %v1030 = vmax.f32 %v1014, 0.0
          %v1031 = vmax.f32 %v1015, 0.0
          %v1032 = vmax.f32 %v1016, 0.0
          %v1033 = vmax.f32 %v1017, 0.0
          %v1034 = vmax.f32 %v1018, 0.0
          %v1035 = vadd.f32 %v1019, %v1020
          %v1036 = vadd.f32 %v1035, %v1021
          %v1037 = vadd.f32 %v1036, %v1022
          %v1038 = vadd.f32 %v1037, %v1023
          %v1039 = vadd.f32 %v1038, %v1024
          %v1040 = vadd.f32 %v1039, %v1025
          %v1041 = vadd.f32 %v1040, %v1026
          %v1042 = vrot.slane %v1041, 4
          %v1043 = vadd.f32 %v1041, %v1042
          %v1044 = vrot.slane %v1043, 2
          %v1045 = vadd.f32 %v1043, %v1044
          %v1046 = vrot.slane %v1045, 1
          %v1047 = vadd.f32 %v1045, %v1046
          %v1048 = vadd.f32 %v1027, %v1028
          %v1049 = vadd.f32 %v1048, %v1029
          %v1050 = vadd.f32 %v1049, %v1030
          %v1051 = vadd.f32 %v1050, %v1031
          %v1052 = vadd.f32 %v1051, %v1032
          %v1053 = vadd.f32 %v1052, %v1033
          %v1054 = vadd.f32 %v1053, %v1034
          %v1055 = vrot.slane %v1054, 4
          %v1056 = vadd.f32 %v1054, %v1055
          %v1057 = vrot.slane %v1056, 2
          %v1058 = vadd.f32 %v1056, %v1057
          %v1059 = vrot.slane %v1058, 1
          %v1060 = vadd.f32 %v1058, %v1059
          %v1061 = vrcp.pop 64.0
          %v1062 = vmul.f32 64.0, %v1061
          %v1063 = vsub.f32 1.0, %v1062
          %v1064 = vmul.f32 %v1061, %v1063
          %v1065 = vadd.f32 %v1061, %v1064
          %vm1066 = vweird.f32 %v1061
          %v1067 = vsel %vm1066, %v1061, %v1065
          %v1068 = vmul.f32 %v1047, %v1067
          %v1069 = vmul.f32 %v1060, %v1067
          %v1070 = vld [vmem:[#allocation11] sm:$0xff]
          %v1071 = vld [vmem:[#allocation11 + $0x8] sm:$0xff]
          %v1072 = vld [vmem:[#allocation11 + $0x10] sm:$0xff]
          %v1073 = vld [vmem:[#allocation11 + $0x18] sm:$0xff]
          %v1074 = vld [vmem:[#allocation11 + $0x20] sm:$0xff]
          %v1075 = vld [vmem:[#allocation11 + $0x28] sm:$0xff]
          %v1076 = vld [vmem:[#allocation11 + $0x30] sm:$0xff]
          %v1077 = vld [vmem:[#allocation11 + $0x38] sm:$0xff]
          %v1078 = vld [vmem:[#allocation11 + $0x40] sm:$0xff]
          %v1079 = vld [vmem:[#allocation11 + $0x48] sm:$0xff]
          %v1080 = vld [vmem:[#allocation11 + $0x50] sm:$0xff]
          %v1081 = vld [vmem:[#allocation11 + $0x58] sm:$0xff]
          %v1082 = vld [vmem:[#allocation11 + $0x60] sm:$0xff]
          %v1083 = vld [vmem:[#allocation11 + $0x68] sm:$0xff]
          %v1084 = vld [vmem:[#allocation11 + $0x70] sm:$0xff]
          %v1085 = vld [vmem:[#allocation11 + $0x78] sm:$0xff]
          %v1086 = vld [vmem:[%s5] sm:$0x1]
          %v1088 = vperm.slane %v1086, 0
          %vm1092 = vcmask 1041409
          %v1093 = vsel %vm1092, %v1069, %v1068
          %1095 = vmatpush.msra.mxu0 %v1085
          %1096 = vmatpush.msra.mxu0 %v1084
          %1097 = vmatpush.msra.mxu0 %v1083
          %1098 = vmatpush.msra.mxu0 %v1082
          %1099 = vmatpush.msra.mxu0 %v1081
          %1100 = vmatpush.msra.mxu0 %v1080
          %1101 = vmatpush.msra.mxu0 %v1079
          %1102 = vmatpush.msra.mxu0 %v1078
          %1103 = vmatpush.msra.mxu0 %v1077
          %1104 = vmatpush.msra.mxu0 %v1076
          %1105 = vmatpush.msra.mxu0 %v1075
          %1106 = vmatpush.msra.mxu0 %v1074
          %1107 = vmatpush.msra.mxu0 %v1073
          %1108 = vmatpush.msra.mxu0 %v1072
          %1109 = vmatpush.msra.mxu0 %v1071
          %1110 = vmatpush.msra.mxu0 %v1070
          %1111 = vmatmul.f32.gmra.mxu0 %v1093
          %v1112 = vpop.f32.mrf.mxu0
          %v1113 = vadd.f32 %v1088, %v1112
          %1114 = vdwg.mxu0
          %1115 = vst [vmem:[#allocation12] sm:$0x3] %v1113
        $region64: #{tpu_custom_call.1} parent=43 // pred_fallthru
          _
        // Predicated region
        $region65: #{tpu_custom_call.1} parent=43 // pred_check
          %p1116 = pneg %p166
        $region66: #{tpu_custom_call.1} parent=43 // pred_check_branch
          %1118 = sbr.rel (%p1116) target = $region68
        $region67: #{tpu_custom_call.1} parent=43 // pred_region
          %1120 = vsyncadd [#allocation8], 0
          %s1122 = sshll.u32 [#allocation12], 4
          %s1123 = int_to_ptr.vmem [resolvable:$true] %s1122
          %s1124 = sshll.u32 %s6, 4
          %s1125 = int_to_ptr.hbm [resolvable:$true] %s1124
          %1127 = dma.vmem_to_hbm [thread:$0]  %s1123, 32, %s1125, [#allocation8]
        $region68: #{tpu_custom_call.1} parent=43 // pred_fallthru
          _
        // Predicated region
        $region69: #{tpu_custom_call.1} parent=43 // pred_check
          %p1128 = pneg %p166
        $region70: #{tpu_custom_call.1} parent=43 // pred_check_branch
          %1130 = sbr.rel (%p1128) target = $region72
        $region71: #{tpu_custom_call.1} parent=43 // pred_region
          %1132 = dma.done [#allocation8], 32
        $region72: #{tpu_custom_call.1} parent=43 // pred_fallthru
          _
      $region44: #{tpu_custom_call.1} parent=5 // pred_fallthru
        _
      %p1133 = scmp.le.s32.totalorder 2, %s17
      // Predicated region
      $region73: #{tpu_custom_call.1} parent=5 // pred_check
        %p1134 = pneg %p1133
      $region74: #{tpu_custom_call.1} parent=5 // pred_check_branch
        %1136 = sbr.rel (%p1134) target = $region76
      $region75: #{tpu_custom_call.1} parent=5 // pred_region
        %s1137 = ssub.s32 %s17, 2
      $region76: #{tpu_custom_call.1} parent=5 // pred_fallthru
        _
    $region6: #{tpu_custom_call.1} parent=1 // loop_footer
      %s21 = sadd.s32 1, %s17
    $region7: #{tpu_custom_call.1} parent=1 // loop_footer_branch
      %16 = sbr.rel target = $region3
    $region8: #{tpu_custom_call.1} parent=1 // loop_exit
      _
    %1138 = vsyncpa [#allocation7], 1
    %s1139 = scalar_lea.sflag [#allocation7], 1
    %1140 = vsyncpa %s1139, 1
    %1141 = vsyncpa [#allocation10], 1
    %1142 = vsyncpa [#allocation8], 1
    %s1143 = scalar_lea.sflag [#allocation8], 1
    %1144 = vsyncpa %s1143, 1

</llo_original>
